<compile_context>
chip_gen: v5e
topology: v5e:2x2
jax: 0.10.0
libtpu: 0.0.40
codegen_flags: <defaults>
</compile_context>

<pallas_src>
import math

import jax
import jax.numpy as jnp
from jax.experimental import pallas as pl
from jax.experimental.pallas import tpu as pltpu

# Small synthetic config (stand-in for BERT_HIDDEN_SIZE=768 etc.)
B = 2            # batch (per sentence side)
S = 8            # sequence length
H = 128          # hidden size
NUM_HEADS = 4
HEAD_DIM = H // NUM_HEADS
INTER = 256      # FFN intermediate size
LAYERS = 2
VOCAB = 64
LN_EPS = 1e-12
PROJ_H1 = H // 2   # Linear(H, H/2)
PROJ_H2 = H // 8   # Linear(H/2, H/8)

_VMEM = pl.BlockSpec(memory_space=pltpu.MemorySpace.VMEM)


def _gelu(x):
    # TODO(synk): PyTorch nn.GELU default is the exact erf form; tanh approx is
    # used here for guaranteed Mosaic lowering (tiny numerical difference).
    return jax.nn.gelu(x, approximate=True)


def _layer_norm(x, g, b):
    mu = jnp.mean(x, axis=-1, keepdims=True)
    var = jnp.mean((x - mu) ** 2, axis=-1, keepdims=True)
    return (x - mu) * jax.lax.rsqrt(var + LN_EPS) * g + b


# ---------------------------------------------------------------------------
# Pallas kernel: the full BERT encoder.
#   grid = (batch_tiles, LAYERS); weights are stacked (LAYERS, ...) and the
#   BlockSpec index_map streams layer l's weights (double-buffered by Pallas).
#   The hidden state for the current batch tile lives in out_ref (same output
#   block for every layer step), so no per-layer HBM round trip.
# ---------------------------------------------------------------------------
def bert_encoder_kernel(h0_ref, maskb_ref,
                        wqkv_ref, bqkv_ref, wo_ref, bo_ref, ln1g_ref, ln1b_ref,
                        w1_ref, b1_ref, w2_ref, b2_ref, ln2g_ref, ln2b_ref,
                        out_ref):
    layer = pl.program_id(1)

    # Initialize the resident hidden-state carry from the embeddings.
    @pl.when(layer == 0)
    def _():
        out_ref[...] = h0_ref[...]

    rows = out_ref.shape[0]          # sentences_in_tile * S
    nb = rows // S                   # sentences in this batch tile

    x = out_ref[...]                 # (rows, H)

    # Hoisted parameter reads (once per layer step).
    wqkv, bqkv = wqkv_ref[...], bqkv_ref[...]
    wo, bo = wo_ref[...], bo_ref[...]
    w1, b1 = w1_ref[...], b1_ref[...]
    w2, b2 = w2_ref[...], b2_ref[...]
    g1, be1 = ln1g_ref[...], ln1b_ref[...]
    g2, be2 = ln2g_ref[...], ln2b_ref[...]
    maskb = maskb_ref[...]           # (nb, 1, S) additive attention-mask bias

    # Fused QKV projection: one (rows, H) x (H, 3H) matmul on the MXU.
    qkv = jnp.dot(x, wqkv, preferred_element_type=jnp.float32) + bqkv
    scale = 1.0 / math.sqrt(HEAD_DIM)
    q3 = (qkv[:, :H] * scale).reshape(nb, S, H)     # scale folded into q
    k3 = qkv[:, H:2 * H].reshape(nb, S, H)
    v3 = qkv[:, 2 * H:].reshape(nb, S, H)

    # Attention: batched (over sentences) einsums per head; 4 statically
    # unrolled head iterations (lane slices of the 128-wide hidden dim).
    heads = []
    for hh in range(NUM_HEADS):
        sl = slice(hh * HEAD_DIM, (hh + 1) * HEAD_DIM)
        qh, kh, vh = q3[:, :, sl], k3[:, :, sl], v3[:, :, sl]
        s = jnp.einsum("bqd,bkd->bqk", qh, kh,
                       preferred_element_type=jnp.float32)       # (nb, S, S)
        s = s + maskb
        s = s - jnp.max(s, axis=-1, keepdims=True)
        p = jnp.exp(s)
        p = p * pl.reciprocal(jnp.sum(p, axis=-1, keepdims=True), approx=True)
        heads.append(jnp.einsum("bqk,bkd->bqd", p, vh,
                                preferred_element_type=jnp.float32))
    ctx = jnp.concatenate(heads, axis=-1).reshape(rows, H)        # (rows, H)

    attn = jnp.dot(ctx, wo, preferred_element_type=jnp.float32) + bo
    x1 = _layer_norm(x + attn, g1, be1)
    ff = _gelu(jnp.dot(x1, w1, preferred_element_type=jnp.float32) + b1)
    ff = jnp.dot(ff, w2, preferred_element_type=jnp.float32) + b2
    out_ref[...] = _layer_norm(x1 + ff, g2, be2)


def bert_encoder(hidden, maskb, enc):
    """hidden: (NB, S, H) f32, maskb: (NB, 1, S) f32 -> (NB, S, H)."""
    nb, s, h = hidden.shape
    assert s == S and h == H
    nbt = 2 if nb % 2 == 0 else 1        # batch tiles ("parallel" axis; 2 TCs on v7x)
    nb_t = nb // nbt
    rows_t = nb_t * S

    h0 = hidden.reshape(nb * S, H)
    wmap = lambda bt, l: (l, 0, 0)       # stream layer l's weights

    grid_spec = pltpu.PrefetchScalarGridSpec(
        num_scalar_prefetch=0,
        grid=(nbt, LAYERS),
        in_specs=[
            pl.BlockSpec((rows_t, H), lambda bt, l: (bt, 0)),       # h0
            pl.BlockSpec((nb_t, 1, S), lambda bt, l: (bt, 0, 0)),   # mask bias
            pl.BlockSpec((None, H, 3 * H), wmap),                   # wqkv
            pl.BlockSpec((None, 1, 3 * H), wmap),                   # bqkv
            pl.BlockSpec((None, H, H), wmap),                       # wo
            pl.BlockSpec((None, 1, H), wmap),                       # bo
            pl.BlockSpec((None, 1, H), wmap),                       # ln1g
            pl.BlockSpec((None, 1, H), wmap),                       # ln1b
            pl.BlockSpec((None, H, INTER), wmap),                   # w1
            pl.BlockSpec((None, 1, INTER), wmap),                   # b1
            pl.BlockSpec((None, INTER, H), wmap),                   # w2
            pl.BlockSpec((None, 1, H), wmap),                       # b2
            pl.BlockSpec((None, 1, H), wmap),                       # ln2g
            pl.BlockSpec((None, 1, H), wmap),                       # ln2b
        ],
        out_specs=pl.BlockSpec((rows_t, H), lambda bt, l: (bt, 0)),
    )
    out = pl.pallas_call(
        bert_encoder_kernel,
        out_shape=jax.ShapeDtypeStruct((nb * S, H), jnp.float32),
        grid_spec=grid_spec,
        compiler_params=pltpu.CompilerParams(
            dimension_semantics=("parallel", "arbitrary")),
    )(h0, maskb,
      enc["wqkv"], enc["bqkv"], enc["wo"], enc["bo"], enc["ln1g"], enc["ln1b"],
      enc["w1"], enc["b1"], enc["w2"], enc["b2"], enc["ln2g"], enc["ln2b"])
    return out.reshape(nb, S, H)


# ---------------------------------------------------------------------------
# Pallas kernel: similarity_proj (Linear->GELU->Linear->GELU, dropouts are
# identity in eval) applied to both CLS embeddings + cosine similarity * 5.
# ---------------------------------------------------------------------------
def sim_head_kernel(c1_ref, c2_ref, w1_ref, b1_ref, w2_ref, b2_ref, out_ref):
    w1, b1 = w1_ref[...], b1_ref[...]
    w2, b2 = w2_ref[...], b2_ref[...]

    def proj(c):
        hid = _gelu(jnp.dot(c, w1, preferred_element_type=jnp.float32) + b1)
        return _gelu(jnp.dot(hid, w2, preferred_element_type=jnp.float32) + b2)

    p1 = proj(c1_ref[...])       # (B, H/8)
    p2 = proj(c2_ref[...])
    n1 = jnp.maximum(jnp.sqrt(jnp.sum(p1 * p1, axis=-1, keepdims=True)), 1e-8)
    n2 = jnp.maximum(jnp.sqrt(jnp.sum(p2 * p2, axis=-1, keepdims=True)), 1e-8)
    cos = jnp.sum(p1 * p2, axis=-1, keepdims=True) * pl.reciprocal(n1 * n2,
                                                                   approx=True)
    out_ref[...] = 5.0 * cos     # (B, 1) logits


def similarity_head(cls1, cls2, proj):
    b = cls1.shape[0]
    args = (cls1, cls2, proj["w1"], proj["b1"], proj["w2"], proj["b2"])
    return pl.pallas_call(
        sim_head_kernel,
        out_shape=jax.ShapeDtypeStruct((b, 1), jnp.float32),
        in_specs=[_VMEM] * len(args),
        out_specs=_VMEM,
    )(*args)


# ---------------------------------------------------------------------------
# Plain-JAX glue: embeddings (gather + LayerNorm), CLS extraction.
# ---------------------------------------------------------------------------
def embed(input_ids, emb):
    x = (emb["word"][input_ids]
         + emb["pos"][None, :S, :]
         + emb["type"][0][None, None, :])
    return _layer_norm(x, emb["lng"], emb["lnb"])


def bert_forward(input_ids, attention_mask, params):
    """SimilarityBERT.forward: BERT -> CLS embedding -> dropout(eval=identity)."""
    hidden = embed(input_ids, params["emb"])                                # (NB,S,H)
    maskb = (1.0 - attention_mask.astype(jnp.float32))[:, None, :] * -10000.0
    hidden = bert_encoder(hidden, maskb, params["enc"])
    # nn.Dropout is identity in eval mode.
    return hidden[:, 0, :]


def predict_similarity(ids1, m1, ids2, m2, params):
    """Both sentences are batched into ONE encoder pass, then split for the head."""
    b = ids1.shape[0]
    ids = jnp.concatenate([ids1, ids2], axis=0)      # (2B, S)
    mask = jnp.concatenate([m1, m2], axis=0)
    cls = bert_forward(ids, mask, params)            # (2B, H)
    return similarity_head(cls[:b], cls[b:], params["proj"])


# ---------------------------------------------------------------------------
# Deterministic parameter init (synthetic; no checkpoint loading).
# Encoder weights are stacked along a leading LAYERS axis; Q/K/V are fused.
# ---------------------------------------------------------------------------
def init_params(key):
    keys = iter(jax.random.split(key, 64))

    def rnd(shape):
        return jax.random.normal(next(keys), shape, jnp.float32) * 0.02

    emb = {
        "word": rnd((VOCAB, H)),
        "pos": rnd((S, H)),
        "type": rnd((2, H)),
        "lng": jnp.ones((H,), jnp.float32),
        "lnb": jnp.zeros((H,), jnp.float32),
    }
    enc = {
        "wqkv": rnd((LAYERS, H, 3 * H)),
        "bqkv": rnd((LAYERS, 1, 3 * H)),
        "wo":   rnd((LAYERS, H, H)),
        "bo":   rnd((LAYERS, 1, H)),
        "ln1g": jnp.ones((LAYERS, 1, H), jnp.float32),
        "ln1b": jnp.zeros((LAYERS, 1, H), jnp.float32),
        "w1":   rnd((LAYERS, H, INTER)),
        "b1":   rnd((LAYERS, 1, INTER)),
        "w2":   rnd((LAYERS, INTER, H)),
        "b2":   rnd((LAYERS, 1, H)),
        "ln2g": jnp.ones((LAYERS, 1, H), jnp.float32),
        "ln2b": jnp.zeros((LAYERS, 1, H), jnp.float32),
    }
    proj = {
        "w1": rnd((H, PROJ_H1)), "b1": rnd((1, PROJ_H1)),
        "w2": rnd((PROJ_H1, PROJ_H2)), "b2": rnd((1, PROJ_H2)),
    }
    return {"emb": emb, "enc": enc, "proj": proj}


if __name__ == "__main__":
    key = jax.random.PRNGKey(0)
    kp, k1, k2 = jax.random.split(key, 3)
    params = init_params(kp)

    input_ids_1 = jax.random.randint(k1, (B, S), 0, VOCAB, dtype=jnp.int32)
    input_ids_2 = jax.random.randint(k2, (B, S), 0, VOCAB, dtype=jnp.int32)
    attention_mask_1 = jnp.ones((B, S), jnp.int32)
    attention_mask_2 = jnp.ones((B, S), jnp.int32).at[:, -2:].set(0)  # some padding

    fwd = jax.jit(bert_forward)
    sim = jax.jit(predict_similarity)

    # SimilarityBERT.forward (CLS embedding)
    cls = fwd(input_ids_1, attention_mask_1, params)
    # SimilarityBERT.predict_similarity (5 * cosine similarity logits, shape (B, 1))
    logits = sim(input_ids_1, attention_mask_1,
                 input_ids_2, attention_mask_2, params)

    jax.block_until_ready(cls)
    jax.block_until_ready(logits)
    assert cls.shape == (B, H) and logits.shape == (B, 1)
    assert bool(jnp.all(jnp.isfinite(cls))) and bool(jnp.all(jnp.isfinite(logits)))
    print("KERNEL_OK")
</pallas_src>

<mosaic_0001>
module attributes {stable_mosaic.version = 11 : i64} {
  func.func @bert_encoder_kernel(%arg0: i32, %arg1: i32, %arg2: memref<8x128xf32, #tpu.memory_space<vmem>>, %arg3: memref<1x1x8xf32, #tpu.memory_space<vmem>>, %arg4: memref<1x128x384xf32, #tpu.memory_space<vmem>>, %arg5: memref<1x1x384xf32, #tpu.memory_space<vmem>>, %arg6: memref<1x128x128xf32, #tpu.memory_space<vmem>>, %arg7: memref<1x1x128xf32, #tpu.memory_space<vmem>>, %arg8: memref<1x1x128xf32, #tpu.memory_space<vmem>>, %arg9: memref<1x1x128xf32, #tpu.memory_space<vmem>>, %arg10: memref<1x128x256xf32, #tpu.memory_space<vmem>>, %arg11: memref<1x1x256xf32, #tpu.memory_space<vmem>>, %arg12: memref<1x256x128xf32, #tpu.memory_space<vmem>>, %arg13: memref<1x1x128xf32, #tpu.memory_space<vmem>>, %arg14: memref<1x1x128xf32, #tpu.memory_space<vmem>>, %arg15: memref<1x1x128xf32, #tpu.memory_space<vmem>>, %arg16: memref<8x128xf32, #tpu.memory_space<vmem>>) attributes {dimension_semantics = [#tpu.dimension_semantics<parallel>, #tpu.dimension_semantics<arbitrary>], iteration_bounds = array<i64: 2, 2>, scalar_prefetch = 0 : i64, scratch_operands = 0 : i64, tpu.core_type = #tpu.core_type<tc>, window_params = [{transform_indices = @transform_0, window_bounds = array<i64: 8, 128>}, {transform_indices = @transform_1, window_bounds = array<i64: 1, 1, 8>}, {transform_indices = @transform_2, window_bounds = array<i64: 1, 128, 384>}, {transform_indices = @transform_3, window_bounds = array<i64: 1, 1, 384>}, {transform_indices = @transform_4, window_bounds = array<i64: 1, 128, 128>}, {transform_indices = @transform_5, window_bounds = array<i64: 1, 1, 128>}, {transform_indices = @transform_6, window_bounds = array<i64: 1, 1, 128>}, {transform_indices = @transform_7, window_bounds = array<i64: 1, 1, 128>}, {transform_indices = @transform_8, window_bounds = array<i64: 1, 128, 256>}, {transform_indices = @transform_9, window_bounds = array<i64: 1, 1, 256>}, {transform_indices = @transform_10, window_bounds = array<i64: 1, 256, 128>}, {transform_indices = @transform_11, window_bounds = array<i64: 1, 1, 128>}, {transform_indices = @transform_12, window_bounds = array<i64: 1, 1, 128>}, {transform_indices = @transform_13, window_bounds = array<i64: 1, 1, 128>}, {transform_indices = @transform_14, window_bounds = array<i64: 8, 128>}]} {
    %c0_i32 = arith.constant 0 : i32
    %0 = arith.cmpi eq, %arg1, %c0_i32 : i32
    %1 = arith.extui %0 : i1 to i32
    %c0_i32_0 = arith.constant 0 : i32
    %2 = arith.cmpi ne, %1, %c0_i32_0 : i32
    scf.if %2 {
      %c0_77 = arith.constant 0 : index
      %c0_78 = arith.constant 0 : index
      %179 = vector.load %arg2[%c0_77, %c0_78] : memref<8x128xf32, #tpu.memory_space<vmem>>, vector<8x128xf32>
      %c0_79 = arith.constant 0 : index
      %c0_80 = arith.constant 0 : index
      %180 = vector.load %arg16[%c0_79, %c0_80] : memref<8x128xf32, #tpu.memory_space<vmem>>, vector<8x128xf32>
      tpu.vector_store %arg16[%c0_79, %c0_80], %179 {strides = array<i32>} : memref<8x128xf32, #tpu.memory_space<vmem>>, vector<8x128xf32>,
    } else {
    }
    %c0 = arith.constant 0 : index
    %c0_1 = arith.constant 0 : index
    %3 = vector.load %arg16[%c0, %c0_1] : memref<8x128xf32, #tpu.memory_space<vmem>>, vector<8x128xf32>
    %c0_2 = arith.constant 0 : index
    %c0_3 = arith.constant 0 : index
    %c0_4 = arith.constant 0 : index
    %4 = vector.load %arg4[%c0_2, %c0_3, %c0_4] : memref<1x128x384xf32, #tpu.memory_space<vmem>>, vector<1x128x384xf32>
    %5 = vector.shape_cast %4 : vector<1x128x384xf32> to vector<128x384xf32>
    %c0_5 = arith.constant 0 : index
    %c0_6 = arith.constant 0 : index
    %c0_7 = arith.constant 0 : index
    %6 = vector.load %arg5[%c0_5, %c0_6, %c0_7] : memref<1x1x384xf32, #tpu.memory_space<vmem>>, vector<1x1x384xf32>
    %7 = vector.shape_cast %6 : vector<1x1x384xf32> to vector<1x384xf32>
    %c0_8 = arith.constant 0 : index
    %c0_9 = arith.constant 0 : index
    %c0_10 = arith.constant 0 : index
    %8 = vector.load %arg6[%c0_8, %c0_9, %c0_10] : memref<1x128x128xf32, #tpu.memory_space<vmem>>, vector<1x128x128xf32>
    %9 = vector.shape_cast %8 : vector<1x128x128xf32> to vector<128x128xf32>
    %c0_11 = arith.constant 0 : index
    %c0_12 = arith.constant 0 : index
    %c0_13 = arith.constant 0 : index
    %10 = vector.load %arg7[%c0_11, %c0_12, %c0_13] : memref<1x1x128xf32, #tpu.memory_space<vmem>>, vector<1x1x128xf32>
    %11 = vector.shape_cast %10 : vector<1x1x128xf32> to vector<1x128xf32>
    %c0_14 = arith.constant 0 : index
    %c0_15 = arith.constant 0 : index
    %c0_16 = arith.constant 0 : index
    %12 = vector.load %arg10[%c0_14, %c0_15, %c0_16] : memref<1x128x256xf32, #tpu.memory_space<vmem>>, vector<1x128x256xf32>
    %13 = vector.shape_cast %12 : vector<1x128x256xf32> to vector<128x256xf32>
    %c0_17 = arith.constant 0 : index
    %c0_18 = arith.constant 0 : index
    %c0_19 = arith.constant 0 : index
    %14 = vector.load %arg11[%c0_17, %c0_18, %c0_19] : memref<1x1x256xf32, #tpu.memory_space<vmem>>, vector<1x1x256xf32>
    %15 = vector.shape_cast %14 : vector<1x1x256xf32> to vector<1x256xf32>
    %c0_20 = arith.constant 0 : index
    %c0_21 = arith.constant 0 : index
    %c0_22 = arith.constant 0 : index
    %16 = vector.load %arg12[%c0_20, %c0_21, %c0_22] : memref<1x256x128xf32, #tpu.memory_space<vmem>>, vector<1x256x128xf32>
    %17 = vector.shape_cast %16 : vector<1x256x128xf32> to vector<256x128xf32>
    %c0_23 = arith.constant 0 : index
    %c0_24 = arith.constant 0 : index
    %c0_25 = arith.constant 0 : index
    %18 = vector.load %arg13[%c0_23, %c0_24, %c0_25] : memref<1x1x128xf32, #tpu.memory_space<vmem>>, vector<1x1x128xf32>
    %19 = vector.shape_cast %18 : vector<1x1x128xf32> to vector<1x128xf32>
    %c0_26 = arith.constant 0 : index
    %c0_27 = arith.constant 0 : index
    %c0_28 = arith.constant 0 : index
    %20 = vector.load %arg8[%c0_26, %c0_27, %c0_28] : memref<1x1x128xf32, #tpu.memory_space<vmem>>, vector<1x1x128xf32>
    %21 = vector.shape_cast %20 : vector<1x1x128xf32> to vector<1x128xf32>
    %c0_29 = arith.constant 0 : index
    %c0_30 = arith.constant 0 : index
    %c0_31 = arith.constant 0 : index
    %22 = vector.load %arg9[%c0_29, %c0_30, %c0_31] : memref<1x1x128xf32, #tpu.memory_space<vmem>>, vector<1x1x128xf32>
    %23 = vector.shape_cast %22 : vector<1x1x128xf32> to vector<1x128xf32>
    %c0_32 = arith.constant 0 : index
    %c0_33 = arith.constant 0 : index
    %c0_34 = arith.constant 0 : index
    %24 = vector.load %arg14[%c0_32, %c0_33, %c0_34] : memref<1x1x128xf32, #tpu.memory_space<vmem>>, vector<1x1x128xf32>
    %25 = vector.shape_cast %24 : vector<1x1x128xf32> to vector<1x128xf32>
    %c0_35 = arith.constant 0 : index
    %c0_36 = arith.constant 0 : index
    %c0_37 = arith.constant 0 : index
    %26 = vector.load %arg15[%c0_35, %c0_36, %c0_37] : memref<1x1x128xf32, #tpu.memory_space<vmem>>, vector<1x1x128xf32>
    %27 = vector.shape_cast %26 : vector<1x1x128xf32> to vector<1x128xf32>
    %c0_38 = arith.constant 0 : index
    %c0_39 = arith.constant 0 : index
    %c0_40 = arith.constant 0 : index
    %28 = vector.load %arg3[%c0_38, %c0_39, %c0_40] : memref<1x1x8xf32, #tpu.memory_space<vmem>>, vector<1x1x8xf32>
    %cst = arith.constant dense<0.000000e+00> : vector<8x384xf32>
    %29 = tpu.matmul %3, %5, %cst {dimension_numbers = #tpu.dot_dimension_numbers<[1], [0], [0], [1], [0, 0, 1, 1], [], []>} : vector<8x128xf32>, vector<128x384xf32>, vector<8x384xf32> -> vector<8x384xf32>
    %30 = vector.broadcast %7 : vector<1x384xf32> to vector<8x384xf32>
    %31 = arith.addf %29, %30 : vector<8x384xf32>
    %32 = vector.extract_strided_slice %31 {offsets = [0, 0], sizes = [8, 128], strides = [1, 1]} : vector<8x384xf32> to vector<8x128xf32>
    %cst_41 = arith.constant 0.176776692 : f32
    %33 = vector.broadcast %cst_41 : f32 to vector<8x128xf32>
    %34 = arith.mulf %32, %33 : vector<8x128xf32>
    %35 = vector.shape_cast %34 : vector<8x128xf32> to vector<1x8x128xf32>
    %36 = vector.extract_strided_slice %31 {offsets = [0, 128], sizes = [8, 128], strides = [1, 1]} : vector<8x384xf32> to vector<8x128xf32>
    %37 = vector.shape_cast %36 : vector<8x128xf32> to vector<1x8x128xf32>
    %38 = vector.extract_strided_slice %31 {offsets = [0, 256], sizes = [8, 128], strides = [1, 1]} : vector<8x384xf32> to vector<8x128xf32>
    %39 = vector.shape_cast %38 : vector<8x128xf32> to vector<1x8x128xf32>
    %40 = vector.extract_strided_slice %35 {offsets = [0, 0, 0], sizes = [1, 8, 32], strides = [1, 1, 1]} : vector<1x8x128xf32> to vector<1x8x32xf32>
    %41 = vector.extract_strided_slice %37 {offsets = [0, 0, 0], sizes = [1, 8, 32], strides = [1, 1, 1]} : vector<1x8x128xf32> to vector<1x8x32xf32>
    %42 = vector.extract_strided_slice %39 {offsets = [0, 0, 0], sizes = [1, 8, 32], strides = [1, 1, 1]} : vector<1x8x128xf32> to vector<1x8x32xf32>
    "tpu.trace_start"() <{level = 10 : i32, message = "bqd,bkd->bqk"}> : () -> ()
    %cst_42 = arith.constant dense<0.000000e+00> : vector<1x8x8xf32>
    %43 = tpu.matmul %40, %41, %cst_42 {dimension_numbers = #tpu.dot_dimension_numbers<[2], [2], [1], [1], [0, 0, 0, 1, 1, 1], [0], [0]>} : vector<1x8x32xf32>, vector<1x8x32xf32>, vector<1x8x8xf32> -> vector<1x8x8xf32>
    "tpu.trace_stop"() : () -> ()
    %44 = vector.broadcast %28 : vector<1x1x8xf32> to vector<1x8x8xf32>
    %45 = arith.addf %43, %44 : vector<1x8x8xf32>
    %cst_43 = arith.constant dense<0xFF800000> : vector<1x8xf32>
    %46 = vector.multi_reduction <maximumf>, %45, %cst_43 [2] : vector<1x8x8xf32> to vector<1x8xf32>
    %47 = vector.shape_cast %46 : vector<1x8xf32> to vector<1x8x1xf32>
    %48 = vector.broadcast %47 : vector<1x8x1xf32> to vector<1x8x8xf32>
    %49 = arith.subf %45, %48 : vector<1x8x8xf32>
    %50 = math.exp %49 : vector<1x8x8xf32>
    %cst_44 = arith.constant dense<0.000000e+00> : vector<1x8xf32>
    %51 = vector.multi_reduction <add>, %50, %cst_44 [2] : vector<1x8x8xf32> to vector<1x8xf32>
    %52 = vector.shape_cast %51 : vector<1x8xf32> to vector<1x8x1xf32>
    %53 = tpu.reciprocal %52 {approx = true} : vector<1x8x1xf32> -> vector<1x8x1xf32>
    %54 = vector.broadcast %53 : vector<1x8x1xf32> to vector<1x8x8xf32>
    %55 = arith.mulf %50, %54 : vector<1x8x8xf32>
    "tpu.trace_start"() <{level = 10 : i32, message = "bqk,bkd->bqd"}> : () -> ()
    %cst_45 = arith.constant dense<0.000000e+00> : vector<1x8x32xf32>
    %56 = tpu.matmul %55, %42, %cst_45 {dimension_numbers = #tpu.dot_dimension_numbers<[2], [1], [1], [2], [0, 0, 0, 1, 1, 2], [0], [0]>} : vector<1x8x8xf32>, vector<1x8x32xf32>, vector<1x8x32xf32> -> vector<1x8x32xf32>
    "tpu.trace_stop"() : () -> ()
    %57 = vector.extract_strided_slice %35 {offsets = [0, 0, 32], sizes = [1, 8, 32], strides = [1, 1, 1]} : vector<1x8x128xf32> to vector<1x8x32xf32>
    %58 = vector.extract_strided_slice %37 {offsets = [0, 0, 32], sizes = [1, 8, 32], strides = [1, 1, 1]} : vector<1x8x128xf32> to vector<1x8x32xf32>
    %59 = vector.extract_strided_slice %39 {offsets = [0, 0, 32], sizes = [1, 8, 32], strides = [1, 1, 1]} : vector<1x8x128xf32> to vector<1x8x32xf32>
    "tpu.trace_start"() <{level = 10 : i32, message = "bqd,bkd->bqk"}> : () -> ()
    %cst_46 = arith.constant dense<0.000000e+00> : vector<1x8x8xf32>
    %60 = tpu.matmul %57, %58, %cst_46 {dimension_numbers = #tpu.dot_dimension_numbers<[2], [2], [1], [1], [0, 0, 0, 1, 1, 1], [0], [0]>} : vector<1x8x32xf32>, vector<1x8x32xf32>, vector<1x8x8xf32> -> vector<1x8x8xf32>
    "tpu.trace_stop"() : () -> ()
    %61 = vector.broadcast %28 : vector<1x1x8xf32> to vector<1x8x8xf32>
    %62 = arith.addf %60, %61 : vector<1x8x8xf32>
    %cst_47 = arith.constant dense<0xFF800000> : vector<1x8xf32>
    %63 = vector.multi_reduction <maximumf>, %62, %cst_47 [2] : vector<1x8x8xf32> to vector<1x8xf32>
    %64 = vector.shape_cast %63 : vector<1x8xf32> to vector<1x8x1xf32>
    %65 = vector.broadcast %64 : vector<1x8x1xf32> to vector<1x8x8xf32>
    %66 = arith.subf %62, %65 : vector<1x8x8xf32>
    %67 = math.exp %66 : vector<1x8x8xf32>
    %cst_48 = arith.constant dense<0.000000e+00> : vector<1x8xf32>
    %68 = vector.multi_reduction <add>, %67, %cst_48 [2] : vector<1x8x8xf32> to vector<1x8xf32>
    %69 = vector.shape_cast %68 : vector<1x8xf32> to vector<1x8x1xf32>
    %70 = tpu.reciprocal %69 {approx = true} : vector<1x8x1xf32> -> vector<1x8x1xf32>
    %71 = vector.broadcast %70 : vector<1x8x1xf32> to vector<1x8x8xf32>
    %72 = arith.mulf %67, %71 : vector<1x8x8xf32>
    "tpu.trace_start"() <{level = 10 : i32, message = "bqk,bkd->bqd"}> : () -> ()
    %cst_49 = arith.constant dense<0.000000e+00> : vector<1x8x32xf32>
    %73 = tpu.matmul %72, %59, %cst_49 {dimension_numbers = #tpu.dot_dimension_numbers<[2], [1], [1], [2], [0, 0, 0, 1, 1, 2], [0], [0]>} : vector<1x8x8xf32>, vector<1x8x32xf32>, vector<1x8x32xf32> -> vector<1x8x32xf32>
    "tpu.trace_stop"() : () -> ()
    %74 = vector.extract_strided_slice %35 {offsets = [0, 0, 64], sizes = [1, 8, 32], strides = [1, 1, 1]} : vector<1x8x128xf32> to vector<1x8x32xf32>
    %75 = vector.extract_strided_slice %37 {offsets = [0, 0, 64], sizes = [1, 8, 32], strides = [1, 1, 1]} : vector<1x8x128xf32> to vector<1x8x32xf32>
    %76 = vector.extract_strided_slice %39 {offsets = [0, 0, 64], sizes = [1, 8, 32], strides = [1, 1, 1]} : vector<1x8x128xf32> to vector<1x8x32xf32>
    "tpu.trace_start"() <{level = 10 : i32, message = "bqd,bkd->bqk"}> : () -> ()
    %cst_50 = arith.constant dense<0.000000e+00> : vector<1x8x8xf32>
    %77 = tpu.matmul %74, %75, %cst_50 {dimension_numbers = #tpu.dot_dimension_numbers<[2], [2], [1], [1], [0, 0, 0, 1, 1, 1], [0], [0]>} : vector<1x8x32xf32>, vector<1x8x32xf32>, vector<1x8x8xf32> -> vector<1x8x8xf32>
    "tpu.trace_stop"() : () -> ()
    %78 = vector.broadcast %28 : vector<1x1x8xf32> to vector<1x8x8xf32>
    %79 = arith.addf %77, %78 : vector<1x8x8xf32>
    %cst_51 = arith.constant dense<0xFF800000> : vector<1x8xf32>
    %80 = vector.multi_reduction <maximumf>, %79, %cst_51 [2] : vector<1x8x8xf32> to vector<1x8xf32>
    %81 = vector.shape_cast %80 : vector<1x8xf32> to vector<1x8x1xf32>
    %82 = vector.broadcast %81 : vector<1x8x1xf32> to vector<1x8x8xf32>
    %83 = arith.subf %79, %82 : vector<1x8x8xf32>
    %84 = math.exp %83 : vector<1x8x8xf32>
    %cst_52 = arith.constant dense<0.000000e+00> : vector<1x8xf32>
    %85 = vector.multi_reduction <add>, %84, %cst_52 [2] : vector<1x8x8xf32> to vector<1x8xf32>
    %86 = vector.shape_cast %85 : vector<1x8xf32> to vector<1x8x1xf32>
    %87 = tpu.reciprocal %86 {approx = true} : vector<1x8x1xf32> -> vector<1x8x1xf32>
    %88 = vector.broadcast %87 : vector<1x8x1xf32> to vector<1x8x8xf32>
    %89 = arith.mulf %84, %88 : vector<1x8x8xf32>
    "tpu.trace_start"() <{level = 10 : i32, message = "bqk,bkd->bqd"}> : () -> ()
    %cst_53 = arith.constant dense<0.000000e+00> : vector<1x8x32xf32>
    %90 = tpu.matmul %89, %76, %cst_53 {dimension_numbers = #tpu.dot_dimension_numbers<[2], [1], [1], [2], [0, 0, 0, 1, 1, 2], [0], [0]>} : vector<1x8x8xf32>, vector<1x8x32xf32>, vector<1x8x32xf32> -> vector<1x8x32xf32>
    "tpu.trace_stop"() : () -> ()
    %91 = vector.extract_strided_slice %35 {offsets = [0, 0, 96], sizes = [1, 8, 32], strides = [1, 1, 1]} : vector<1x8x128xf32> to vector<1x8x32xf32>
    %92 = vector.extract_strided_slice %37 {offsets = [0, 0, 96], sizes = [1, 8, 32], strides = [1, 1, 1]} : vector<1x8x128xf32> to vector<1x8x32xf32>
    %93 = vector.extract_strided_slice %39 {offsets = [0, 0, 96], sizes = [1, 8, 32], strides = [1, 1, 1]} : vector<1x8x128xf32> to vector<1x8x32xf32>
    "tpu.trace_start"() <{level = 10 : i32, message = "bqd,bkd->bqk"}> : () -> ()
    %cst_54 = arith.constant dense<0.000000e+00> : vector<1x8x8xf32>
    %94 = tpu.matmul %91, %92, %cst_54 {dimension_numbers = #tpu.dot_dimension_numbers<[2], [2], [1], [1], [0, 0, 0, 1, 1, 1], [0], [0]>} : vector<1x8x32xf32>, vector<1x8x32xf32>, vector<1x8x8xf32> -> vector<1x8x8xf32>
    "tpu.trace_stop"() : () -> ()
    %95 = vector.broadcast %28 : vector<1x1x8xf32> to vector<1x8x8xf32>
    %96 = arith.addf %94, %95 : vector<1x8x8xf32>
    %cst_55 = arith.constant dense<0xFF800000> : vector<1x8xf32>
    %97 = vector.multi_reduction <maximumf>, %96, %cst_55 [2] : vector<1x8x8xf32> to vector<1x8xf32>
    %98 = vector.shape_cast %97 : vector<1x8xf32> to vector<1x8x1xf32>
    %99 = vector.broadcast %98 : vector<1x8x1xf32> to vector<1x8x8xf32>
    %100 = arith.subf %96, %99 : vector<1x8x8xf32>
    %101 = math.exp %100 : vector<1x8x8xf32>
    %cst_56 = arith.constant dense<0.000000e+00> : vector<1x8xf32>
    %102 = vector.multi_reduction <add>, %101, %cst_56 [2] : vector<1x8x8xf32> to vector<1x8xf32>
    %103 = vector.shape_cast %102 : vector<1x8xf32> to vector<1x8x1xf32>
    %104 = tpu.reciprocal %103 {approx = true} : vector<1x8x1xf32> -> vector<1x8x1xf32>
    %105 = vector.broadcast %104 : vector<1x8x1xf32> to vector<1x8x8xf32>
    %106 = arith.mulf %101, %105 : vector<1x8x8xf32>
    "tpu.trace_start"() <{level = 10 : i32, message = "bqk,bkd->bqd"}> : () -> ()
    %cst_57 = arith.constant dense<0.000000e+00> : vector<1x8x32xf32>
    %107 = tpu.matmul %106, %93, %cst_57 {dimension_numbers = #tpu.dot_dimension_numbers<[2], [1], [1], [2], [0, 0, 0, 1, 1, 2], [0], [0]>} : vector<1x8x8xf32>, vector<1x8x32xf32>, vector<1x8x32xf32> -> vector<1x8x32xf32>
    "tpu.trace_stop"() : () -> ()
    %108 = tpu.concatenate %56, %73, %90, %107 in 2 : vector<1x8x32xf32>, vector<1x8x32xf32>, vector<1x8x32xf32>, vector<1x8x32xf32> -> vector<1x8x128xf32>
    %109 = vector.shape_cast %108 : vector<1x8x128xf32> to vector<8x128xf32>
    %cst_58 = arith.constant dense<0.000000e+00> : vector<8x128xf32>
    %110 = tpu.matmul %109, %9, %cst_58 {dimension_numbers = #tpu.dot_dimension_numbers<[1], [0], [0], [1], [0, 0, 1, 1], [], []>} : vector<8x128xf32>, vector<128x128xf32>, vector<8x128xf32> -> vector<8x128xf32>
    %111 = vector.broadcast %11 : vector<1x128xf32> to vector<8x128xf32>
    %112 = arith.addf %110, %111 : vector<8x128xf32>
    %113 = arith.addf %3, %112 : vector<8x128xf32>
    %cst_59 = arith.constant dense<0.000000e+00> : vector<8xf32>
    %114 = vector.multi_reduction <add>, %113, %cst_59 [1] : vector<8x128xf32> to vector<8xf32>
    %115 = vector.shape_cast %114 : vector<8xf32> to vector<8x1xf32>
    %cst_60 = arith.constant 1.280000e+02 : f32
    %116 = vector.broadcast %cst_60 : f32 to vector<8x1xf32>
    %117 = arith.divf %115, %116 : vector<8x1xf32>
    %118 = vector.broadcast %117 : vector<8x1xf32> to vector<8x128xf32>
    %119 = arith.subf %113, %118 : vector<8x128xf32>
    %120 = arith.mulf %119, %119 : vector<8x128xf32>
    %cst_61 = arith.constant dense<0.000000e+00> : vector<8xf32>
    %121 = vector.multi_reduction <add>, %120, %cst_61 [1] : vector<8x128xf32> to vector<8xf32>
    %122 = vector.shape_cast %121 : vector<8xf32> to vector<8x1xf32>
    %cst_62 = arith.constant 1.280000e+02 : f32
    %123 = vector.broadcast %cst_62 : f32 to vector<8x1xf32>
    %124 = arith.divf %122, %123 : vector<8x1xf32>
    %125 = vector.broadcast %117 : vector<8x1xf32> to vector<8x128xf32>
    %126 = arith.subf %113, %125 : vector<8x128xf32>
    %cst_63 = arith.constant 9.99999996E-13 : f32
    %127 = vector.broadcast %cst_63 : f32 to vector<8x1xf32>
    %128 = arith.addf %124, %127 : vector<8x1xf32>
    %129 = math.rsqrt %128 : vector<8x1xf32>
    %130 = vector.broadcast %129 : vector<8x1xf32> to vector<8x128xf32>
    %131 = arith.mulf %126, %130 : vector<8x128xf32>
    %132 = vector.broadcast %21 : vector<1x128xf32> to vector<8x128xf32>
    %133 = arith.mulf %131, %132 : vector<8x128xf32>
    %134 = vector.broadcast %23 : vector<1x128xf32> to vector<8x128xf32>
    %135 = arith.addf %133, %134 : vector<8x128xf32>
    %cst_64 = arith.constant dense<0.000000e+00> : vector<8x256xf32>
    %136 = tpu.matmul %135, %13, %cst_64 {dimension_numbers = #tpu.dot_dimension_numbers<[1], [0], [0], [1], [0, 0, 1, 1], [], []>} : vector<8x128xf32>, vector<128x256xf32>, vector<8x256xf32> -> vector<8x256xf32>
    %137 = vector.broadcast %15 : vector<1x256xf32> to vector<8x256xf32>
    %138 = arith.addf %136, %137 : vector<8x256xf32>
    %139 = arith.mulf %138, %138 : vector<8x256xf32>
    %140 = arith.mulf %138, %139 : vector<8x256xf32>
    %cst_65 = arith.constant 4.471500e-02 : f32
    %141 = vector.broadcast %cst_65 : f32 to vector<8x256xf32>
    %142 = arith.mulf %141, %140 : vector<8x256xf32>
    %143 = arith.addf %138, %142 : vector<8x256xf32>
    %cst_66 = arith.constant 0.797884583 : f32
    %144 = vector.broadcast %cst_66 : f32 to vector<8x256xf32>
    %145 = arith.mulf %144, %143 : vector<8x256xf32>
    %146 = math.tanh %145 : vector<8x256xf32>
    %cst_67 = arith.constant 1.000000e+00 : f32
    %147 = vector.broadcast %cst_67 : f32 to vector<8x256xf32>
    %148 = arith.addf %147, %146 : vector<8x256xf32>
    %cst_68 = arith.constant 5.000000e-01 : f32
    %149 = vector.broadcast %cst_68 : f32 to vector<8x256xf32>
    %150 = arith.mulf %149, %148 : vector<8x256xf32>
    %151 = arith.mulf %138, %150 : vector<8x256xf32>
    %cst_69 = arith.constant dense<0.000000e+00> : vector<8x128xf32>
    %152 = tpu.matmul %151, %17, %cst_69 {dimension_numbers = #tpu.dot_dimension_numbers<[1], [0], [0], [1], [0, 0, 1, 1], [], []>} : vector<8x256xf32>, vector<256x128xf32>, vector<8x128xf32> -> vector<8x128xf32>
    %153 = vector.broadcast %19 : vector<1x128xf32> to vector<8x128xf32>
    %154 = arith.addf %152, %153 : vector<8x128xf32>
    %155 = arith.addf %135, %154 : vector<8x128xf32>
    %cst_70 = arith.constant dense<0.000000e+00> : vector<8xf32>
    %156 = vector.multi_reduction <add>, %155, %cst_70 [1] : vector<8x128xf32> to vector<8xf32>
    %157 = vector.shape_cast %156 : vector<8xf32> to vector<8x1xf32>
    %cst_71 = arith.constant 1.280000e+02 : f32
    %158 = vector.broadcast %cst_71 : f32 to vector<8x1xf32>
    %159 = arith.divf %157, %158 : vector<8x1xf32>
    %160 = vector.broadcast %159 : vector<8x1xf32> to vector<8x128xf32>
    %161 = arith.subf %155, %160 : vector<8x128xf32>
    %162 = arith.mulf %161, %161 : vector<8x128xf32>
    %cst_72 = arith.constant dense<0.000000e+00> : vector<8xf32>
    %163 = vector.multi_reduction <add>, %162, %cst_72 [1] : vector<8x128xf32> to vector<8xf32>
    %164 = vector.shape_cast %163 : vector<8xf32> to vector<8x1xf32>
    %cst_73 = arith.constant 1.280000e+02 : f32
    %165 = vector.broadcast %cst_73 : f32 to vector<8x1xf32>
    %166 = arith.divf %164, %165 : vector<8x1xf32>
    %167 = vector.broadcast %159 : vector<8x1xf32> to vector<8x128xf32>
    %168 = arith.subf %155, %167 : vector<8x128xf32>
    %cst_74 = arith.constant 9.99999996E-13 : f32
    %169 = vector.broadcast %cst_74 : f32 to vector<8x1xf32>
    %170 = arith.addf %166, %169 : vector<8x1xf32>
    %171 = math.rsqrt %170 : vector<8x1xf32>
    %172 = vector.broadcast %171 : vector<8x1xf32> to vector<8x128xf32>
    %173 = arith.mulf %168, %172 : vector<8x128xf32>
    %174 = vector.broadcast %25 : vector<1x128xf32> to vector<8x128xf32>
    %175 = arith.mulf %173, %174 : vector<8x128xf32>
    %176 = vector.broadcast %27 : vector<1x128xf32> to vector<8x128xf32>
    %177 = arith.addf %175, %176 : vector<8x128xf32>
    %c0_75 = arith.constant 0 : index
    %c0_76 = arith.constant 0 : index
    %178 = vector.load %arg16[%c0_75, %c0_76] : memref<8x128xf32, #tpu.memory_space<vmem>>, vector<8x128xf32>
    tpu.vector_store %arg16[%c0_75, %c0_76], %177 {strides = array<i32>} : memref<8x128xf32, #tpu.memory_space<vmem>>, vector<8x128xf32>,
    return
  }
  func.func @transform_0(%arg0: i32, %arg1: i32) -> (i32, i32) {
    %c0_i32 = arith.constant 0 : i32
    %c0_i32_0 = arith.constant 0 : i32
    return %arg0, %c0_i32 : i32, i32
  }
  func.func @transform_1(%arg0: i32, %arg1: i32) -> (i32, i32, i32) {
    %c0_i32 = arith.constant 0 : i32
    %c0_i32_0 = arith.constant 0 : i32
    %c0_i32_1 = arith.constant 0 : i32
    return %arg0, %c0_i32, %c0_i32_0 : i32, i32, i32
  }
  func.func @transform_2(%arg0: i32, %arg1: i32) -> (i32, i32, i32) {
    %c0_i32 = arith.constant 0 : i32
    %c0_i32_0 = arith.constant 0 : i32
    %c0_i32_1 = arith.constant 0 : i32
    return %arg1, %c0_i32, %c0_i32_0 : i32, i32, i32
  }
  func.func @transform_3(%arg0: i32, %arg1: i32) -> (i32, i32, i32) {
    %c0_i32 = arith.constant 0 : i32
    %c0_i32_0 = arith.constant 0 : i32
    %c0_i32_1 = arith.constant 0 : i32
    return %arg1, %c0_i32, %c0_i32_0 : i32, i32, i32
  }
  func.func @transform_4(%arg0: i32, %arg1: i32) -> (i32, i32, i32) {
    %c0_i32 = arith.constant 0 : i32
    %c0_i32_0 = arith.constant 0 : i32
    %c0_i32_1 = arith.constant 0 : i32
    return %arg1, %c0_i32, %c0_i32_0 : i32, i32, i32
  }
  func.func @transform_5(%arg0: i32, %arg1: i32) -> (i32, i32, i32) {
    %c0_i32 = arith.constant 0 : i32
    %c0_i32_0 = arith.constant 0 : i32
    %c0_i32_1 = arith.constant 0 : i32
    return %arg1, %c0_i32, %c0_i32_0 : i32, i32, i32
  }
  func.func @transform_6(%arg0: i32, %arg1: i32) -> (i32, i32, i32) {
    %c0_i32 = arith.constant 0 : i32
    %c0_i32_0 = arith.constant 0 : i32
    %c0_i32_1 = arith.constant 0 : i32
    return %arg1, %c0_i32, %c0_i32_0 : i32, i32, i32
  }
  func.func @transform_7(%arg0: i32, %arg1: i32) -> (i32, i32, i32) {
    %c0_i32 = arith.constant 0 : i32
    %c0_i32_0 = arith.constant 0 : i32
    %c0_i32_1 = arith.constant 0 : i32
    return %arg1, %c0_i32, %c0_i32_0 : i32, i32, i32
  }
  func.func @transform_8(%arg0: i32, %arg1: i32) -> (i32, i32, i32) {
    %c0_i32 = arith.constant 0 : i32
    %c0_i32_0 = arith.constant 0 : i32
    %c0_i32_1 = arith.constant 0 : i32
    return %arg1, %c0_i32, %c0_i32_0 : i32, i32, i32
  }
  func.func @transform_9(%arg0: i32, %arg1: i32) -> (i32, i32, i32) {
    %c0_i32 = arith.constant 0 : i32
    %c0_i32_0 = arith.constant 0 : i32
    %c0_i32_1 = arith.constant 0 : i32
    return %arg1, %c0_i32, %c0_i32_0 : i32, i32, i32
  }
  func.func @transform_10(%arg0: i32, %arg1: i32) -> (i32, i32, i32) {
    %c0_i32 = arith.constant 0 : i32
    %c0_i32_0 = arith.constant 0 : i32
    %c0_i32_1 = arith.constant 0 : i32
    return %arg1, %c0_i32, %c0_i32_0 : i32, i32, i32
  }
  func.func @transform_11(%arg0: i32, %arg1: i32) -> (i32, i32, i32) {
    %c0_i32 = arith.constant 0 : i32
    %c0_i32_0 = arith.constant 0 : i32
    %c0_i32_1 = arith.constant 0 : i32
    return %arg1, %c0_i32, %c0_i32_0 : i32, i32, i32
  }
  func.func @transform_12(%arg0: i32, %arg1: i32) -> (i32, i32, i32) {
    %c0_i32 = arith.constant 0 : i32
    %c0_i32_0 = arith.constant 0 : i32
    %c0_i32_1 = arith.constant 0 : i32
    return %arg1, %c0_i32, %c0_i32_0 : i32, i32, i32
  }
  func.func @transform_13(%arg0: i32, %arg1: i32) -> (i32, i32, i32) {
    %c0_i32 = arith.constant 0 : i32
    %c0_i32_0 = arith.constant 0 : i32
    %c0_i32_1 = arith.constant 0 : i32
    return %arg1, %c0_i32, %c0_i32_0 : i32, i32, i32
  }
  func.func @transform_14(%arg0: i32, %arg1: i32) -> (i32, i32) {
    %c0_i32 = arith.constant 0 : i32
    %c0_i32_0 = arith.constant 0 : i32
    return %arg0, %c0_i32 : i32, i32
  }
}

</mosaic_0001>

<llo_original>
// kernel: bert_forward.1
$region0: #{bert_forward.1}
  #allocation0 [shape = 'u32[]', space=smem, size = 0x4, offset = 0x4, fixed_abs, tag = 'smem constant byte address 0x4 - core index']
  #allocation1 [shape = 'u32[72,128]{1,0:T(1,128)}', space=vmem, size = 0x9000, scoped, tag = 'internal scratch']
  %s0 = inlined_call_operand.vmem [shape: f32[16,128], index: 0, kind: input, shape index: {}]
  %s1 = inlined_call_operand.vmem [shape: f32[2,1,8], index: 1, kind: input, shape index: {}]
  %s2 = inlined_call_operand.hbm [shape: f32[2,128,384], index: 2, kind: input, shape index: {}]
  %s3 = inlined_call_operand.vmem [shape: f32[2,1,384], index: 3, kind: input, shape index: {}]
  %s4 = inlined_call_operand.hbm [shape: f32[2,128,128], index: 4, kind: input, shape index: {}]
  %s5 = inlined_call_operand.vmem [shape: f32[2,1,128], index: 5, kind: input, shape index: {}]
  %s6 = inlined_call_operand.vmem [shape: f32[2,1,128], index: 6, kind: input, shape index: {}]
  %s7 = inlined_call_operand.vmem [shape: f32[2,1,128], index: 7, kind: input, shape index: {}]
  %s8 = inlined_call_operand.hbm [shape: f32[2,128,256], index: 8, kind: input, shape index: {}]
  %s9 = inlined_call_operand.vmem [shape: f32[2,1,256], index: 9, kind: input, shape index: {}]
  %s10 = inlined_call_operand.hbm [shape: f32[2,256,128], index: 10, kind: input, shape index: {}]
  %s11 = inlined_call_operand.vmem [shape: f32[2,1,128], index: 11, kind: input, shape index: {}]
  %s12 = inlined_call_operand.vmem [shape: f32[2,1,128], index: 12, kind: input, shape index: {}]
  %s13 = inlined_call_operand.vmem [shape: f32[2,1,128], index: 13, kind: input, shape index: {}]
  %s14 = inlined_call_operand.vmem [shape: f32[16,128], index: 14, kind: output, shape index: {}]
  %s15 = sld [smem:[#allocation0]]
  $region109: #{bert_forward.1} parent=0
    _
  %s17 = ssub.s32 1, %s15
  %s18 = scalar_select 0, %s17, %s15
  $region1: #{bert_forward.1} parent=0
    #allocation2 [shape = 'u8[393216]{0}', space=vmem, size = 0x60000, scoped, tag = 'input window, operand 2']
    #allocation3 [shape = 's32[2]{0}', space=sflag, size = 0x8, scoped, tag = 'scoped memory for bert_forward.1']
    #allocation4 [shape = 'u8[131072]{0}', space=vmem, size = 0x20000, scoped, tag = 'input window, operand 4']
    #allocation5 [shape = 's32[2]{0}', space=sflag, size = 0x8, scoped, tag = 'scoped memory for bert_forward.1']
    #allocation6 [shape = 'u8[262144]{0}', space=vmem, size = 0x40000, scoped, tag = 'input window, operand 8']
    #allocation7 [shape = 'u8[262144]{0}', space=vmem, size = 0x40000, scoped, tag = 'input window, operand 10']
    #allocation8 [shape = 's32[2]{0}', space=sflag, size = 0x8, scoped, tag = 'scoped memory for bert_forward.1']
    %19 = vsyncpa [#allocation3], 0
    %s20 = scalar_lea.sflag [#allocation3], 1
    %21 = vsyncpa %s20, 0
    %22 = vsyncpa [#allocation5], 0
    %s23 = scalar_lea.sflag [#allocation5], 1
    %24 = vsyncpa %s23, 0
    %25 = vsyncpa [#allocation8], 0
    %s26 = scalar_lea.sflag [#allocation8], 1
    %27 = vsyncpa %s26, 0
    loop: start=0, step=1, limit=6
    $region2: #{bert_forward.1} parent=1 // loop_pre_header
      _
    $region3: #{bert_forward.1} parent=1 // loop_header
      %s29 = sphi 0, %s33
      %p30 = scmp.ge.s32.totalorder %s29, 6
      %s36 = sphi 0, %s48
      %s37 = sphi 0, %s44
      %s38 = sphi 0, %s36
      %s39 = sphi 0, %s37
      %s40 = sphi 0, %s38
      %s41 = sphi 0, %s39
      %s51 = sphi 0, %s53
      %s54 = sphi 0, %s51
      %s55 = sphi 0, %s54
      %s71 = sphi 0, %s55
      %s77 = sphi 0, %s79
      %s80 = sphi 0, %s77
      %s81 = sphi 0, %s80
      %s97 = sphi 0, %s81
      %s103 = sphi 0, %s105
      %s106 = sphi 0, %s103
      %s107 = sphi 0, %s106
      %s123 = sphi 0, %s107
      %s129 = sphi 0, %s131
      %s132 = sphi 0, %s129
      %s133 = sphi 0, %s132
      %s149 = sphi 0, %s133
      %s155 = sphi 0, %s157
      %s158 = sphi 0, %s155
      %s159 = sphi 0, %s158
      %s175 = sphi 0, %s159
      %s181 = sphi 0, %s183
      %s184 = sphi 0, %s181
      %s185 = sphi 0, %s184
      %s201 = sphi 0, %s185
      %s207 = sphi 0, %s209
      %s210 = sphi 0, %s207
      %s211 = sphi 0, %s210
      %s227 = sphi 0, %s211
      %s233 = sphi 0, %s235
      %s236 = sphi 0, %s233
      %s237 = sphi 0, %s236
      %s253 = sphi 0, %s237
      %s259 = sphi 0, %s261
      %s262 = sphi 0, %s259
      %s263 = sphi 0, %s262
      %s279 = sphi 0, %s263
      %s285 = sphi 0, %s287
      %s288 = sphi 0, %s285
      %s289 = sphi 0, %s288
      %s305 = sphi 0, %s289
      %s311 = sphi 0, %s313
      %s314 = sphi 0, %s311
      %s315 = sphi 0, %s314
      %s331 = sphi 0, %s315
      %s337 = sphi 0, %s339
      %s340 = sphi 0, %s337
      %s341 = sphi 0, %s340
      %s357 = sphi 0, %s341
      %s363 = sphi 0, %s365
      %s366 = sphi 0, %s363
      %s367 = sphi 0, %s366
      %s383 = sphi 0, %s367
      %s389 = sphi 0, %s391
      %s392 = sphi 0, %s389
      %s393 = sphi 0, %s392
      %s409 = sphi 0, %s393
      %s415 = sphi 0, %s417
      %s418 = sphi 0, %s415
      %s419 = sphi 0, %s418
      %s435 = sphi 0, %s419
    $region4: #{bert_forward.1} parent=1 // loop_header_branch
      %32 = sbr.rel (%p30) target = $region8
    $region5: #{bert_forward.1} parent=1 // loop_body
      %s34 = ssub.s32 %s29, 1
      %s35 = ssub.s32 %s29, 2
      %s42 = sadd.s32 1, %s37
      %p43 = scmp.ge.s32.totalorder %s42, 2
      %s44 = scalar_select %p43, 0, %s42
      %s45 = sadd.s32 1, %s36
      %s46 = scalar_select %p43, %s45, %s36
      %p47 = scmp.ge.s32.totalorder %s46, 2
      %s48 = scalar_select %p47, 0, %s46
      %s49 = ssub.s32 %s36, %s48
      %p50 = scmp.eq.s32.totalorder %s49, 0
      %s52 = sadd.s32 %s51, 1
      %s53 = scalar_select %p50, %s51, %s52
      %p56 = pneg %p50
      %p57 = scmp.eq.s32.totalorder %s29, 3
      %p58 = por %p56, %p57
      %p59 = scmp.ne.s32.totalorder %s51, %s54
      %p60 = scmp.eq.s32.totalorder %s29, 0
      %p61 = por %p59, %p60
      %p62 = scmp.ne.s32.totalorder %s51, %s54
      %p63 = scmp.eq.s32.totalorder %s34, 3
      %p64 = por %p62, %p63
      %p65 = scmp.ne.s32.totalorder %s54, %s55
      %p66 = scmp.eq.s32.totalorder %s34, 0
      %p67 = por %p65, %p66
      %p68 = scmp.ne.s32.totalorder %s54, %s55
      %p69 = scmp.eq.s32.totalorder %s35, 3
      %p70 = por %p68, %p69
      %p72 = scmp.ne.s32.totalorder %s55, %s71
      %p73 = scmp.eq.s32.totalorder %s35, 0
      %p74 = por %p72, %p73
      %s75 = ssub.s32 %s36, %s48
      %p76 = scmp.eq.s32.totalorder %s75, 0
      %s78 = sadd.s32 %s77, 1
      %s79 = scalar_select %p76, %s77, %s78
      %p82 = pneg %p76
      %p83 = scmp.eq.s32.totalorder %s29, 3
      %p84 = por %p82, %p83
      %p85 = scmp.ne.s32.totalorder %s77, %s80
      %p86 = scmp.eq.s32.totalorder %s29, 0
      %p87 = por %p85, %p86
      %p88 = scmp.ne.s32.totalorder %s77, %s80
      %p89 = scmp.eq.s32.totalorder %s34, 3
      %p90 = por %p88, %p89
      %p91 = scmp.ne.s32.totalorder %s80, %s81
      %p92 = scmp.eq.s32.totalorder %s34, 0
      %p93 = por %p91, %p92
      %p94 = scmp.ne.s32.totalorder %s80, %s81
      %p95 = scmp.eq.s32.totalorder %s35, 3
      %p96 = por %p94, %p95
      %p98 = scmp.ne.s32.totalorder %s81, %s97
      %p99 = scmp.eq.s32.totalorder %s35, 0
      %p100 = por %p98, %p99
      %s101 = ssub.s32 %s37, %s44
      %p102 = scmp.eq.s32.totalorder %s101, 0
      %s104 = sadd.s32 %s103, 1
      %s105 = scalar_select %p102, %s103, %s104
      %p108 = pneg %p102
      %p109 = scmp.eq.s32.totalorder %s29, 3
      %p110 = por %p108, %p109
      %p111 = scmp.ne.s32.totalorder %s103, %s106
      %p112 = scmp.eq.s32.totalorder %s29, 0
      %p113 = por %p111, %p112
      %p114 = scmp.ne.s32.totalorder %s103, %s106
      %p115 = scmp.eq.s32.totalorder %s34, 3
      %p116 = por %p114, %p115
      %p117 = scmp.ne.s32.totalorder %s106, %s107
      %p118 = scmp.eq.s32.totalorder %s34, 0
      %p119 = por %p117, %p118
      %p120 = scmp.ne.s32.totalorder %s106, %s107
      %p121 = scmp.eq.s32.totalorder %s35, 3
      %p122 = por %p120, %p121
      %p124 = scmp.ne.s32.totalorder %s107, %s123
      %p125 = scmp.eq.s32.totalorder %s35, 0
      %p126 = por %p124, %p125
      %s127 = ssub.s32 %s37, %s44
      %p128 = scmp.eq.s32.totalorder %s127, 0
      %s130 = sadd.s32 %s129, 1
      %s131 = scalar_select %p128, %s129, %s130
      %p134 = pneg %p128
      %p135 = scmp.eq.s32.totalorder %s29, 3
      %p136 = por %p134, %p135
      %p137 = scmp.ne.s32.totalorder %s129, %s132
      %p138 = scmp.eq.s32.totalorder %s29, 0
      %p139 = por %p137, %p138
      %p140 = scmp.ne.s32.totalorder %s129, %s132
      %p141 = scmp.eq.s32.totalorder %s34, 3
      %p142 = por %p140, %p141
      %p143 = scmp.ne.s32.totalorder %s132, %s133
      %p144 = scmp.eq.s32.totalorder %s34, 0
      %p145 = por %p143, %p144
      %p146 = scmp.ne.s32.totalorder %s132, %s133
      %p147 = scmp.eq.s32.totalorder %s35, 3
      %p148 = por %p146, %p147
      %p150 = scmp.ne.s32.totalorder %s133, %s149
      %p151 = scmp.eq.s32.totalorder %s35, 0
      %p152 = por %p150, %p151
      %s153 = ssub.s32 %s37, %s44
      %p154 = scmp.eq.s32.totalorder %s153, 0
      %s156 = sadd.s32 %s155, 1
      %s157 = scalar_select %p154, %s155, %s156
      %p160 = pneg %p154
      %p161 = scmp.eq.s32.totalorder %s29, 3
      %p162 = por %p160, %p161
      %p163 = scmp.ne.s32.totalorder %s155, %s158
      %p164 = scmp.eq.s32.totalorder %s29, 0
      %p165 = por %p163, %p164
      %p166 = scmp.ne.s32.totalorder %s155, %s158
      %p167 = scmp.eq.s32.totalorder %s34, 3
      %p168 = por %p166, %p167
      %p169 = scmp.ne.s32.totalorder %s158, %s159
      %p170 = scmp.eq.s32.totalorder %s34, 0
      %p171 = por %p169, %p170
      %p172 = scmp.ne.s32.totalorder %s158, %s159
      %p173 = scmp.eq.s32.totalorder %s35, 3
      %p174 = por %p172, %p173
      %p176 = scmp.ne.s32.totalorder %s159, %s175
      %p177 = scmp.eq.s32.totalorder %s35, 0
      %p178 = por %p176, %p177
      %s179 = ssub.s32 %s37, %s44
      %p180 = scmp.eq.s32.totalorder %s179, 0
      %s182 = sadd.s32 %s181, 1
      %s183 = scalar_select %p180, %s181, %s182
      %p186 = pneg %p180
      %p187 = scmp.eq.s32.totalorder %s29, 3
      %p188 = por %p186, %p187
      %p189 = scmp.ne.s32.totalorder %s181, %s184
      %p190 = scmp.eq.s32.totalorder %s29, 0
      %p191 = por %p189, %p190
      %p192 = scmp.ne.s32.totalorder %s181, %s184
      %p193 = scmp.eq.s32.totalorder %s34, 3
      %p194 = por %p192, %p193
      %p195 = scmp.ne.s32.totalorder %s184, %s185
      %p196 = scmp.eq.s32.totalorder %s34, 0
      %p197 = por %p195, %p196
      %p198 = scmp.ne.s32.totalorder %s184, %s185
      %p199 = scmp.eq.s32.totalorder %s35, 3
      %p200 = por %p198, %p199
      %p202 = scmp.ne.s32.totalorder %s185, %s201
      %p203 = scmp.eq.s32.totalorder %s35, 0
      %p204 = por %p202, %p203
      %s205 = ssub.s32 %s37, %s44
      %p206 = scmp.eq.s32.totalorder %s205, 0
      %s208 = sadd.s32 %s207, 1
      %s209 = scalar_select %p206, %s207, %s208
      %p212 = pneg %p206
      %p213 = scmp.eq.s32.totalorder %s29, 3
      %p214 = por %p212, %p213
      %p215 = scmp.ne.s32.totalorder %s207, %s210
      %p216 = scmp.eq.s32.totalorder %s29, 0
      %p217 = por %p215, %p216
      %p218 = scmp.ne.s32.totalorder %s207, %s210
      %p219 = scmp.eq.s32.totalorder %s34, 3
      %p220 = por %p218, %p219
      %p221 = scmp.ne.s32.totalorder %s210, %s211
      %p222 = scmp.eq.s32.totalorder %s34, 0
      %p223 = por %p221, %p222
      %p224 = scmp.ne.s32.totalorder %s210, %s211
      %p225 = scmp.eq.s32.totalorder %s35, 3
      %p226 = por %p224, %p225
      %p228 = scmp.ne.s32.totalorder %s211, %s227
      %p229 = scmp.eq.s32.totalorder %s35, 0
      %p230 = por %p228, %p229
      %s231 = ssub.s32 %s37, %s44
      %p232 = scmp.eq.s32.totalorder %s231, 0
      %s234 = sadd.s32 %s233, 1
      %s235 = scalar_select %p232, %s233, %s234
      %p238 = pneg %p232
      %p239 = scmp.eq.s32.totalorder %s29, 3
      %p240 = por %p238, %p239
      %p241 = scmp.ne.s32.totalorder %s233, %s236
      %p242 = scmp.eq.s32.totalorder %s29, 0
      %p243 = por %p241, %p242
      %p244 = scmp.ne.s32.totalorder %s233, %s236
      %p245 = scmp.eq.s32.totalorder %s34, 3
      %p246 = por %p244, %p245
      %p247 = scmp.ne.s32.totalorder %s236, %s237
      %p248 = scmp.eq.s32.totalorder %s34, 0
      %p249 = por %p247, %p248
      %p250 = scmp.ne.s32.totalorder %s236, %s237
      %p251 = scmp.eq.s32.totalorder %s35, 3
      %p252 = por %p250, %p251
      %p254 = scmp.ne.s32.totalorder %s237, %s253
      %p255 = scmp.eq.s32.totalorder %s35, 0
      %p256 = por %p254, %p255
      %s257 = ssub.s32 %s37, %s44
      %p258 = scmp.eq.s32.totalorder %s257, 0
      %s260 = sadd.s32 %s259, 1
      %s261 = scalar_select %p258, %s259, %s260
      %p264 = pneg %p258
      %p265 = scmp.eq.s32.totalorder %s29, 3
      %p266 = por %p264, %p265
      %p267 = scmp.ne.s32.totalorder %s259, %s262
      %p268 = scmp.eq.s32.totalorder %s29, 0
      %p269 = por %p267, %p268
      %p270 = scmp.ne.s32.totalorder %s259, %s262
      %p271 = scmp.eq.s32.totalorder %s34, 3
      %p272 = por %p270, %p271
      %p273 = scmp.ne.s32.totalorder %s262, %s263
      %p274 = scmp.eq.s32.totalorder %s34, 0
      %p275 = por %p273, %p274
      %p276 = scmp.ne.s32.totalorder %s262, %s263
      %p277 = scmp.eq.s32.totalorder %s35, 3
      %p278 = por %p276, %p277
      %p280 = scmp.ne.s32.totalorder %s263, %s279
      %p281 = scmp.eq.s32.totalorder %s35, 0
      %p282 = por %p280, %p281
      %s283 = ssub.s32 %s37, %s44
      %p284 = scmp.eq.s32.totalorder %s283, 0
      %s286 = sadd.s32 %s285, 1
      %s287 = scalar_select %p284, %s285, %s286
      %p290 = pneg %p284
      %p291 = scmp.eq.s32.totalorder %s29, 3
      %p292 = por %p290, %p291
      %p293 = scmp.ne.s32.totalorder %s285, %s288
      %p294 = scmp.eq.s32.totalorder %s29, 0
      %p295 = por %p293, %p294
      %p296 = scmp.ne.s32.totalorder %s285, %s288
      %p297 = scmp.eq.s32.totalorder %s34, 3
      %p298 = por %p296, %p297
      %p299 = scmp.ne.s32.totalorder %s288, %s289
      %p300 = scmp.eq.s32.totalorder %s34, 0
      %p301 = por %p299, %p300
      %p302 = scmp.ne.s32.totalorder %s288, %s289
      %p303 = scmp.eq.s32.totalorder %s35, 3
      %p304 = por %p302, %p303
      %p306 = scmp.ne.s32.totalorder %s289, %s305
      %p307 = scmp.eq.s32.totalorder %s35, 0
      %p308 = por %p306, %p307
      %s309 = ssub.s32 %s37, %s44
      %p310 = scmp.eq.s32.totalorder %s309, 0
      %s312 = sadd.s32 %s311, 1
      %s313 = scalar_select %p310, %s311, %s312
      %p316 = pneg %p310
      %p317 = scmp.eq.s32.totalorder %s29, 3
      %p318 = por %p316, %p317
      %p319 = scmp.ne.s32.totalorder %s311, %s314
      %p320 = scmp.eq.s32.totalorder %s29, 0
      %p321 = por %p319, %p320
      %p322 = scmp.ne.s32.totalorder %s311, %s314
      %p323 = scmp.eq.s32.totalorder %s34, 3
      %p324 = por %p322, %p323
      %p325 = scmp.ne.s32.totalorder %s314, %s315
      %p326 = scmp.eq.s32.totalorder %s34, 0
      %p327 = por %p325, %p326
      %p328 = scmp.ne.s32.totalorder %s314, %s315
      %p329 = scmp.eq.s32.totalorder %s35, 3
      %p330 = por %p328, %p329
      %p332 = scmp.ne.s32.totalorder %s315, %s331
      %p333 = scmp.eq.s32.totalorder %s35, 0
      %p334 = por %p332, %p333
      %s335 = ssub.s32 %s37, %s44
      %p336 = scmp.eq.s32.totalorder %s335, 0
      %s338 = sadd.s32 %s337, 1
      %s339 = scalar_select %p336, %s337, %s338
      %p342 = pneg %p336
      %p343 = scmp.eq.s32.totalorder %s29, 3
      %p344 = por %p342, %p343
      %p345 = scmp.ne.s32.totalorder %s337, %s340
      %p346 = scmp.eq.s32.totalorder %s29, 0
      %p347 = por %p345, %p346
      %p348 = scmp.ne.s32.totalorder %s337, %s340
      %p349 = scmp.eq.s32.totalorder %s34, 3
      %p350 = por %p348, %p349
      %p351 = scmp.ne.s32.totalorder %s340, %s341
      %p352 = scmp.eq.s32.totalorder %s34, 0
      %p353 = por %p351, %p352
      %p354 = scmp.ne.s32.totalorder %s340, %s341
      %p355 = scmp.eq.s32.totalorder %s35, 3
      %p356 = por %p354, %p355
      %p358 = scmp.ne.s32.totalorder %s341, %s357
      %p359 = scmp.eq.s32.totalorder %s35, 0
      %p360 = por %p358, %p359
      %s361 = ssub.s32 %s37, %s44
      %p362 = scmp.eq.s32.totalorder %s361, 0
      %s364 = sadd.s32 %s363, 1
      %s365 = scalar_select %p362, %s363, %s364
      %p368 = pneg %p362
      %p369 = scmp.eq.s32.totalorder %s29, 3
      %p370 = por %p368, %p369
      %p371 = scmp.ne.s32.totalorder %s363, %s366
      %p372 = scmp.eq.s32.totalorder %s29, 0
      %p373 = por %p371, %p372
      %p374 = scmp.ne.s32.totalorder %s363, %s366
      %p375 = scmp.eq.s32.totalorder %s34, 3
      %p376 = por %p374, %p375
      %p377 = scmp.ne.s32.totalorder %s366, %s367
      %p378 = scmp.eq.s32.totalorder %s34, 0
      %p379 = por %p377, %p378
      %p380 = scmp.ne.s32.totalorder %s366, %s367
      %p381 = scmp.eq.s32.totalorder %s35, 3
      %p382 = por %p380, %p381
      %p384 = scmp.ne.s32.totalorder %s367, %s383
      %p385 = scmp.eq.s32.totalorder %s35, 0
      %p386 = por %p384, %p385
      %s387 = ssub.s32 %s37, %s44
      %p388 = scmp.eq.s32.totalorder %s387, 0
      %s390 = sadd.s32 %s389, 1
      %s391 = scalar_select %p388, %s389, %s390
      %p394 = pneg %p388
      %p395 = scmp.eq.s32.totalorder %s29, 3
      %p396 = por %p394, %p395
      %p397 = scmp.ne.s32.totalorder %s389, %s392
      %p398 = scmp.eq.s32.totalorder %s29, 0
      %p399 = por %p397, %p398
      %p400 = scmp.ne.s32.totalorder %s389, %s392
      %p401 = scmp.eq.s32.totalorder %s34, 3
      %p402 = por %p400, %p401
      %p403 = scmp.ne.s32.totalorder %s392, %s393
      %p404 = scmp.eq.s32.totalorder %s34, 0
      %p405 = por %p403, %p404
      %p406 = scmp.ne.s32.totalorder %s392, %s393
      %p407 = scmp.eq.s32.totalorder %s35, 3
      %p408 = por %p406, %p407
      %p410 = scmp.ne.s32.totalorder %s393, %s409
      %p411 = scmp.eq.s32.totalorder %s35, 0
      %p412 = por %p410, %p411
      %s413 = ssub.s32 %s36, %s48
      %p414 = scmp.eq.s32.totalorder %s413, 0
      %s416 = sadd.s32 %s415, 1
      %s417 = scalar_select %p414, %s415, %s416
      %p420 = pneg %p414
      %p421 = scmp.eq.s32.totalorder %s29, 3
      %p422 = por %p420, %p421
      %p423 = scmp.ne.s32.totalorder %s415, %s418
      %p424 = scmp.eq.s32.totalorder %s29, 0
      %p425 = por %p423, %p424
      %p426 = scmp.ne.s32.totalorder %s415, %s418
      %p427 = scmp.eq.s32.totalorder %s34, 3
      %p428 = por %p426, %p427
      %p429 = scmp.ne.s32.totalorder %s418, %s419
      %p430 = scmp.eq.s32.totalorder %s34, 0
      %p431 = por %p429, %p430
      %p432 = scmp.ne.s32.totalorder %s418, %s419
      %p433 = scmp.eq.s32.totalorder %s35, 3
      %p434 = por %p432, %p433
      %p436 = scmp.ne.s32.totalorder %s419, %s435
      %p437 = scmp.eq.s32.totalorder %s35, 0
      %p438 = por %p436, %p437
      %p439 = scmp.le.s32.totalorder 1, %s29
      %p440 = scmp.lt.s32.totalorder %s29, 5
      %p441 = pnand %p439, %p440
      %p442 = pneg %p441
      // Predicated region
      $region9: #{bert_forward.1} parent=5 // pred_check
        _
      $region10: #{bert_forward.1} parent=5 // pred_check_branch
        %444 = sbr.rel (%p441) target = $region12
      $region11: #{bert_forward.1} parent=5 // pred_region
        %s445 = ssub.s32 %s29, 1
      $region12: #{bert_forward.1} parent=5 // pred_fallthru
        _
      %p446 = scmp.lt.s32.totalorder %s29, 4
      // Predicated region
      $region13: #{bert_forward.1} parent=5 // pred_check
        %p447 = pneg %p446
      $region14: #{bert_forward.1} parent=5 // pred_check_branch
        %449 = sbr.rel (%p447) target = $region16
      $region15: #{bert_forward.1} parent=5 // pred_region
        // Predicated region
        $region17: #{bert_forward.1} parent=15 // pred_check
          %p450 = pneg %p61
        $region18: #{bert_forward.1} parent=15 // pred_check_branch
          %452 = sbr.rel (%p450) target = $region20
        $region19: #{bert_forward.1} parent=15 // pred_region
          %p453 = scmp.lt.s32.totalorder %s36, 1
          %s454 = scalar_select %p453, %s36, 1
          %s455 = smul.addr %s454, 8
          %s456 = scalar_lea.vmem %s0, %s455
        $region20: #{bert_forward.1} parent=15 // pred_fallthru
          _
        // Predicated region
        $region21: #{bert_forward.1} parent=15 // pred_check
          %p457 = pneg %p87
        $region22: #{bert_forward.1} parent=15 // pred_check_branch
          %459 = sbr.rel (%p457) target = $region24
        $region23: #{bert_forward.1} parent=15 // pred_region
          %p460 = scmp.lt.s32.totalorder %s36, 1
          %s461 = scalar_select %p460, %s36, 1
          %s462 = scalar_lea.vmem %s1, %s461
        $region24: #{bert_forward.1} parent=15 // pred_fallthru
          _
        // Predicated region
        $region25: #{bert_forward.1} parent=15 // pred_check
          %p463 = pneg %p113
        $region26: #{bert_forward.1} parent=15 // pred_check_branch
          %465 = sbr.rel (%p463) target = $region28
        $region27: #{bert_forward.1} parent=15 // pred_region
          %s466 = sand.u32 %s103, 1
          %s467 = scalar_lea.sflag [#allocation3], %s466
          %s468 = sand.u32 %s103, 1
          %s469 = smul.addr %s468, 384
          %s470 = scalar_lea.vmem [#allocation2], %s469
          %472 = vsyncadd %s467, 0
          %s473 = smul.addr %s37, 48
          %s474 = smul.addr %s473, 8
          %s475 = scalar_lea.hbm %s2, %s474
          %s476 = sshll.u32 %s475, 4
          %s477 = int_to_ptr.hbm [resolvable:$true] %s476
          %s478 = sshll.u32 %s470, 4
          %s479 = int_to_ptr.vmem [resolvable:$true] %s478
          %484 = dma.hbm_to_vmem [thread:$0]  %s477, 6144, %s479, %s467, 384, 384, 24
        $region28: #{bert_forward.1} parent=15 // pred_fallthru
          _
        // Predicated region
        $region29: #{bert_forward.1} parent=15 // pred_check
          %p485 = pneg %p139
        $region30: #{bert_forward.1} parent=15 // pred_check_branch
          %487 = sbr.rel (%p485) target = $region32
        $region31: #{bert_forward.1} parent=15 // pred_region
          %p488 = scmp.lt.s32.totalorder %s37, 1
          %s489 = scalar_select %p488, %s37, 1
          %s490 = smul.addr %s489, 3
          %s491 = scalar_lea.vmem %s3, %s490
        $region32: #{bert_forward.1} parent=15 // pred_fallthru
          _
        // Predicated region
        $region33: #{bert_forward.1} parent=15 // pred_check
          %p492 = pneg %p165
        $region34: #{bert_forward.1} parent=15 // pred_check_branch
          %494 = sbr.rel (%p492) target = $region36
        $region35: #{bert_forward.1} parent=15 // pred_region
          %s495 = sand.u32 %s29, 1
          %s496 = scalar_lea.sflag [#allocation5], %s495
          %s497 = sand.u32 %s155, 1
          %s498 = smul.addr %s497, 128
          %s499 = scalar_lea.vmem [#allocation4], %s498
          %501 = vsyncadd %s496, 0
          %s502 = smul.addr %s37, 16
          %s503 = smul.addr %s502, 8
          %s504 = scalar_lea.hbm %s4, %s503
          %s505 = sshll.u32 %s504, 4
          %s506 = int_to_ptr.hbm [resolvable:$true] %s505
          %s507 = sshll.u32 %s499, 4
          %s508 = int_to_ptr.vmem [resolvable:$true] %s507
          %513 = dma.hbm_to_vmem [thread:$0]  %s506, 2048, %s508, %s496, 128, 128, 8
        $region36: #{bert_forward.1} parent=15 // pred_fallthru
          _
        // Predicated region
        $region37: #{bert_forward.1} parent=15 // pred_check
          %p514 = pneg %p191
        $region38: #{bert_forward.1} parent=15 // pred_check_branch
          %516 = sbr.rel (%p514) target = $region40
        $region39: #{bert_forward.1} parent=15 // pred_region
          %p517 = scmp.lt.s32.totalorder %s37, 1
          %s518 = scalar_select %p517, %s37, 1
          %s519 = scalar_lea.vmem %s5, %s518
        $region40: #{bert_forward.1} parent=15 // pred_fallthru
          _
        // Predicated region
        $region41: #{bert_forward.1} parent=15 // pred_check
          %p520 = pneg %p217
        $region42: #{bert_forward.1} parent=15 // pred_check_branch
          %522 = sbr.rel (%p520) target = $region44
        $region43: #{bert_forward.1} parent=15 // pred_region
          %p523 = scmp.lt.s32.totalorder %s37, 1
          %s524 = scalar_select %p523, %s37, 1
          %s525 = scalar_lea.vmem %s6, %s524
        $region44: #{bert_forward.1} parent=15 // pred_fallthru
          _
        // Predicated region
        $region45: #{bert_forward.1} parent=15 // pred_check
          %p526 = pneg %p243
        $region46: #{bert_forward.1} parent=15 // pred_check_branch
          %528 = sbr.rel (%p526) target = $region48
        $region47: #{bert_forward.1} parent=15 // pred_region
          %p529 = scmp.lt.s32.totalorder %s37, 1
          %s530 = scalar_select %p529, %s37, 1
          %s531 = scalar_lea.vmem %s7, %s530
        $region48: #{bert_forward.1} parent=15 // pred_fallthru
          _
        // Predicated region
        $region49: #{bert_forward.1} parent=15 // pred_check
          %p532 = pneg %p269
        $region50: #{bert_forward.1} parent=15 // pred_check_branch
          %534 = sbr.rel (%p532) target = $region52
        $region51: #{bert_forward.1} parent=15 // pred_region
          %s535 = sand.u32 %s29, 1
          %s536 = scalar_lea.sflag [#allocation5], %s535
          %s537 = sand.u32 %s259, 1
          %s538 = smul.addr %s537, 256
          %s539 = scalar_lea.vmem [#allocation6], %s538
          %541 = vsyncadd %s536, 0
          %s542 = smul.addr %s37, 32
          %s543 = smul.addr %s542, 8
          %s544 = scalar_lea.hbm %s8, %s543
          %s545 = sshll.u32 %s544, 4
          %s546 = int_to_ptr.hbm [resolvable:$true] %s545
          %s547 = sshll.u32 %s539, 4
          %s548 = int_to_ptr.vmem [resolvable:$true] %s547
          %553 = dma.hbm_to_vmem [thread:$0]  %s546, 4096, %s548, %s536, 256, 256, 16
        $region52: #{bert_forward.1} parent=15 // pred_fallthru
          _
        // Predicated region
        $region53: #{bert_forward.1} parent=15 // pred_check
          %p554 = pneg %p295
        $region54: #{bert_forward.1} parent=15 // pred_check_branch
          %556 = sbr.rel (%p554) target = $region56
        $region55: #{bert_forward.1} parent=15 // pred_region
          %p557 = scmp.lt.s32.totalorder %s37, 1
          %s558 = scalar_select %p557, %s37, 1
          %s559 = smul.addr %s558, 2
          %s560 = scalar_lea.vmem %s9, %s559
        $region56: #{bert_forward.1} parent=15 // pred_fallthru
          _
        // Predicated region
        $region57: #{bert_forward.1} parent=15 // pred_check
          %p561 = pneg %p321
        $region58: #{bert_forward.1} parent=15 // pred_check_branch
          %563 = sbr.rel (%p561) target = $region60
        $region59: #{bert_forward.1} parent=15 // pred_region
          %s564 = sand.u32 %s311, 1
          %s565 = scalar_lea.sflag [#allocation8], %s564
          %s566 = sand.u32 %s311, 1
          %s567 = smul.addr %s566, 256
          %s568 = scalar_lea.vmem [#allocation7], %s567
          %570 = vsyncadd %s565, 0
          %s571 = smul.addr %s37, 32
          %s572 = smul.addr %s571, 8
          %s573 = scalar_lea.hbm %s10, %s572
          %s574 = sshll.u32 %s573, 4
          %s575 = int_to_ptr.hbm [resolvable:$true] %s574
          %s576 = sshll.u32 %s568, 4
          %s577 = int_to_ptr.vmem [resolvable:$true] %s576
          %582 = dma.hbm_to_vmem [thread:$0]  %s575, 4096, %s577, %s565, 128, 128, 8
        $region60: #{bert_forward.1} parent=15 // pred_fallthru
          _
        // Predicated region
        $region61: #{bert_forward.1} parent=15 // pred_check
          %p583 = pneg %p347
        $region62: #{bert_forward.1} parent=15 // pred_check_branch
          %585 = sbr.rel (%p583) target = $region64
        $region63: #{bert_forward.1} parent=15 // pred_region
          %p586 = scmp.lt.s32.totalorder %s37, 1
          %s587 = scalar_select %p586, %s37, 1
          %s588 = scalar_lea.vmem %s11, %s587
        $region64: #{bert_forward.1} parent=15 // pred_fallthru
          _
        // Predicated region
        $region65: #{bert_forward.1} parent=15 // pred_check
          %p589 = pneg %p373
        $region66: #{bert_forward.1} parent=15 // pred_check_branch
          %591 = sbr.rel (%p589) target = $region68
        $region67: #{bert_forward.1} parent=15 // pred_region
          %p592 = scmp.lt.s32.totalorder %s37, 1
          %s593 = scalar_select %p592, %s37, 1
          %s594 = scalar_lea.vmem %s12, %s593
        $region68: #{bert_forward.1} parent=15 // pred_fallthru
          _
        // Predicated region
        $region69: #{bert_forward.1} parent=15 // pred_check
          %p595 = pneg %p399
        $region70: #{bert_forward.1} parent=15 // pred_check_branch
          %597 = sbr.rel (%p595) target = $region72
        $region71: #{bert_forward.1} parent=15 // pred_region
          %p598 = scmp.lt.s32.totalorder %s37, 1
          %s599 = scalar_select %p598, %s37, 1
          %s600 = scalar_lea.vmem %s13, %s599
        $region72: #{bert_forward.1} parent=15 // pred_fallthru
          _
      $region16: #{bert_forward.1} parent=5 // pred_fallthru
        _
      %p601 = scmp.le.s32.totalorder 1, %s29
      %p602 = scmp.lt.s32.totalorder %s29, 5
      %p603 = pnand %p601, %p602
      %p604 = pneg %p603
      // Predicated region
      $region73: #{bert_forward.1} parent=5 // pred_check
        _
      $region74: #{bert_forward.1} parent=5 // pred_check_branch
        %606 = sbr.rel (%p603) target = $region76
      $region75: #{bert_forward.1} parent=5 // pred_region
        %s607 = ssub.s32 %s29, 1
        %s608 = sand.u32 %s106, 1
        %s609 = scalar_lea.sflag [#allocation3], %s608
        %s610 = sand.u32 %s106, 1
        %s611 = smul.addr %s610, 384
        %s612 = scalar_lea.vmem [#allocation2], %s611
        // Predicated region
        $region77: #{bert_forward.1} parent=75 // pred_check
          %p613 = pneg %p119
        $region78: #{bert_forward.1} parent=75 // pred_check_branch
          %615 = sbr.rel (%p613) target = $region80
        $region79: #{bert_forward.1} parent=75 // pred_region
          %617 = dma.done %s609, 6144
        $region80: #{bert_forward.1} parent=75 // pred_fallthru
          _
        %s618 = sand.u32 %s34, 1
        %s619 = scalar_lea.sflag [#allocation5], %s618
        %s620 = sand.u32 %s158, 1
        %s621 = smul.addr %s620, 128
        %s622 = scalar_lea.vmem [#allocation4], %s621
        // Predicated region
        $region81: #{bert_forward.1} parent=75 // pred_check
          %p623 = pneg %p171
        $region82: #{bert_forward.1} parent=75 // pred_check_branch
          %625 = sbr.rel (%p623) target = $region84
        $region83: #{bert_forward.1} parent=75 // pred_region
          %627 = dma.done %s619, 2048
        $region84: #{bert_forward.1} parent=75 // pred_fallthru
          _
        %s628 = sand.u32 %s34, 1
        %s629 = scalar_lea.sflag [#allocation5], %s628
        %s630 = sand.u32 %s262, 1
        %s631 = smul.addr %s630, 256
        %s632 = scalar_lea.vmem [#allocation6], %s631
        // Predicated region
        $region85: #{bert_forward.1} parent=75 // pred_check
          %p633 = pneg %p275
        $region86: #{bert_forward.1} parent=75 // pred_check_branch
          %635 = sbr.rel (%p633) target = $region88
        $region87: #{bert_forward.1} parent=75 // pred_region
          %637 = dma.done %s629, 4096
        $region88: #{bert_forward.1} parent=75 // pred_fallthru
          _
        %s638 = sand.u32 %s314, 1
        %s639 = scalar_lea.sflag [#allocation8], %s638
        %s640 = sand.u32 %s314, 1
        %s641 = smul.addr %s640, 256
        %s642 = scalar_lea.vmem [#allocation7], %s641
        // Predicated region
        $region89: #{bert_forward.1} parent=75 // pred_check
          %p643 = pneg %p327
        $region90: #{bert_forward.1} parent=75 // pred_check_branch
          %645 = sbr.rel (%p643) target = $region92
        $region91: #{bert_forward.1} parent=75 // pred_region
          %647 = dma.done %s639, 4096
        $region92: #{bert_forward.1} parent=75 // pred_fallthru
          _
        %p648 = scmp.lt.s32.totalorder %s38, 1
        %s649 = scalar_select %p648, %s38, 1
        %s650 = smul.addr %s649, 8
        %s651 = scalar_lea.vmem %s0, %s650
        %p652 = pneg %p67
        %p653 = pneg %p64
        %p654 = scmp.lt.s32.totalorder %s38, 1
        %s655 = scalar_select %p654, %s38, 1
        %s656 = scalar_lea.vmem %s1, %s655
        %p657 = pneg %p93
        %p658 = pneg %p90
        %s659 = sand.u32 %s106, 1
        %s660 = scalar_lea.sflag [#allocation3], %s659
        %s661 = sand.u32 %s106, 1
        %s662 = smul.addr %s661, 384
        %s663 = scalar_lea.vmem [#allocation2], %s662
        %p664 = pneg %p119
        %p665 = pneg %p116
        %p666 = scmp.lt.s32.totalorder %s39, 1
        %s667 = scalar_select %p666, %s39, 1
        %s668 = smul.addr %s667, 3
        %s669 = scalar_lea.vmem %s3, %s668
        %p670 = pneg %p145
        %p671 = pneg %p142
        %s672 = sand.u32 %s34, 1
        %s673 = scalar_lea.sflag [#allocation5], %s672
        %s674 = sand.u32 %s158, 1
        %s675 = smul.addr %s674, 128
        %s676 = scalar_lea.vmem [#allocation4], %s675
        %p677 = pneg %p171
        %p678 = pneg %p168
        %p679 = scmp.lt.s32.totalorder %s39, 1
        %s680 = scalar_select %p679, %s39, 1
        %s681 = scalar_lea.vmem %s5, %s680
        %p682 = pneg %p197
        %p683 = pneg %p194
        %p684 = scmp.lt.s32.totalorder %s39, 1
        %s685 = scalar_select %p684, %s39, 1
        %s686 = scalar_lea.vmem %s6, %s685
        %p687 = pneg %p223
        %p688 = pneg %p220
        %p689 = scmp.lt.s32.totalorder %s39, 1
        %s690 = scalar_select %p689, %s39, 1
        %s691 = scalar_lea.vmem %s7, %s690
        %p692 = pneg %p249
        %p693 = pneg %p246
        %s694 = sand.u32 %s34, 1
        %s695 = scalar_lea.sflag [#allocation5], %s694
        %s696 = sand.u32 %s262, 1
        %s697 = smul.addr %s696, 256
        %s698 = scalar_lea.vmem [#allocation6], %s697
        %p699 = pneg %p275
        %p700 = pneg %p272
        %p701 = scmp.lt.s32.totalorder %s39, 1
        %s702 = scalar_select %p701, %s39, 1
        %s703 = smul.addr %s702, 2
        %s704 = scalar_lea.vmem %s9, %s703
        %p705 = pneg %p301
        %p706 = pneg %p298
        %s707 = sand.u32 %s314, 1
        %s708 = scalar_lea.sflag [#allocation8], %s707
        %s709 = sand.u32 %s314, 1
        %s710 = smul.addr %s709, 256
        %s711 = scalar_lea.vmem [#allocation7], %s710
        %p712 = pneg %p327
        %p713 = pneg %p324
        %p714 = scmp.lt.s32.totalorder %s39, 1
        %s715 = scalar_select %p714, %s39, 1
        %s716 = scalar_lea.vmem %s11, %s715
        %p717 = pneg %p353
        %p718 = pneg %p350
        %p719 = scmp.lt.s32.totalorder %s39, 1
        %s720 = scalar_select %p719, %s39, 1
        %s721 = scalar_lea.vmem %s12, %s720
        %p722 = pneg %p379
        %p723 = pneg %p376
        %p724 = scmp.lt.s32.totalorder %s39, 1
        %s725 = scalar_select %p724, %s39, 1
        %s726 = scalar_lea.vmem %s13, %s725
        %p727 = pneg %p405
        %p728 = pneg %p402
        %p729 = pneg %p431
        %p730 = pneg %p428
        %p731 = scmp.lt.s32.totalorder %s38, 1
        %s732 = scalar_select %p731, %s38, 1
        %s733 = smul.addr %s732, 8
        %s734 = scalar_lea.vmem %s14, %s733
        %p735 = scmp.lt.s32.totalorder %s38, 1
        %s736 = scalar_select %p735, %s38, 1
        %s737 = smul.addr %s736, 8
        %s738 = scalar_lea.vmem %s0, %s737
        %p739 = scmp.lt.s32.totalorder %s38, 1
        %s740 = scalar_select %p739, %s38, 1
        %s741 = scalar_lea.vmem %s1, %s740
        %p742 = scmp.lt.s32.totalorder %s39, 1
        %s743 = scalar_select %p742, %s39, 1
        %s744 = smul.addr %s743, 3
        %s745 = scalar_lea.vmem %s3, %s744
        %p746 = scmp.lt.s32.totalorder %s39, 1
        %s747 = scalar_select %p746, %s39, 1
        %s748 = scalar_lea.vmem %s5, %s747
        %p749 = scmp.lt.s32.totalorder %s39, 1
        %s750 = scalar_select %p749, %s39, 1
        %s751 = scalar_lea.vmem %s6, %s750
        %p752 = scmp.lt.s32.totalorder %s39, 1
        %s753 = scalar_select %p752, %s39, 1
        %s754 = scalar_lea.vmem %s7, %s753
        %p755 = scmp.lt.s32.totalorder %s39, 1
        %s756 = scalar_select %p755, %s39, 1
        %s757 = smul.addr %s756, 2
        %s758 = scalar_lea.vmem %s9, %s757
        %p759 = scmp.lt.s32.totalorder %s39, 1
        %s760 = scalar_select %p759, %s39, 1
        %s761 = scalar_lea.vmem %s11, %s760
        %p762 = scmp.lt.s32.totalorder %s39, 1
        %s763 = scalar_select %p762, %s39, 1
        %s764 = scalar_lea.vmem %s12, %s763
        %p765 = scmp.lt.s32.totalorder %s39, 1
        %s766 = scalar_select %p765, %s39, 1
        %s767 = scalar_lea.vmem %s13, %s766
        %p768 = scmp.lt.s32.totalorder %s38, 1
        %s769 = scalar_select %p768, %s38, 1
        %s770 = smul.addr %s769, 8
        %s771 = scalar_lea.vmem %s14, %s770
        %p772 = scmp.eq.s32.totalorder %s39, 0
        // Predicated region
        $region93: #{bert_forward.1} parent=75 // pred_check
          %p773 = pneg %p772
        $region94: #{bert_forward.1} parent=75 // pred_check_branch
          %775 = sbr.rel (%p773) target = $region96
        $region95: #{bert_forward.1} parent=75 // pred_region
          %v776 = vld [vmem:[%s738] sm:$0xff]
          %777 = vst [vmem:[%s771] sm:$0xff] %v776
        $region96: #{bert_forward.1} parent=75 // pred_fallthru
          _
        %v778 = vld [vmem:[%s771] sm:$0xff]
        %v779 = vld [vmem:[%s612] sm:$0xff]
        %v780 = vld [vmem:[%s612 + $0x8] sm:$0xff]
        %v781 = vld [vmem:[%s612 + $0x10] sm:$0xff]
        %v782 = vld [vmem:[%s612 + $0x18] sm:$0xff]
        %v783 = vld [vmem:[%s612 + $0x20] sm:$0xff]
        %v784 = vld [vmem:[%s612 + $0x28] sm:$0xff]
        %v785 = vld [vmem:[%s612 + $0x30] sm:$0xff]
        %v786 = vld [vmem:[%s612 + $0x38] sm:$0xff]
        %v787 = vld [vmem:[%s612 + $0x40] sm:$0xff]
        %v788 = vld [vmem:[%s612 + $0x48] sm:$0xff]
        %v789 = vld [vmem:[%s612 + $0x50] sm:$0xff]
        %v790 = vld [vmem:[%s612 + $0x58] sm:$0xff]
        %v791 = vld [vmem:[%s612 + $0x60] sm:$0xff]
        %v792 = vld [vmem:[%s612 + $0x68] sm:$0xff]
        %v793 = vld [vmem:[%s612 + $0x70] sm:$0xff]
        %v794 = vld [vmem:[%s612 + $0x78] sm:$0xff]
        %v795 = vld [vmem:[%s612 + $0x80] sm:$0xff]
        %v796 = vld [vmem:[%s612 + $0x88] sm:$0xff]
        %v797 = vld [vmem:[%s612 + $0x90] sm:$0xff]
        %v798 = vld [vmem:[%s612 + $0x98] sm:$0xff]
        %v799 = vld [vmem:[%s612 + $0xa0] sm:$0xff]
        %v800 = vld [vmem:[%s612 + $0xa8] sm:$0xff]
        %v801 = vld [vmem:[%s612 + $0xb0] sm:$0xff]
        %v802 = vld [vmem:[%s612 + $0xb8] sm:$0xff]
        %v803 = vld [vmem:[%s612 + $0xc0] sm:$0xff]
        %v804 = vld [vmem:[%s612 + $0xc8] sm:$0xff]
        %v805 = vld [vmem:[%s612 + $0xd0] sm:$0xff]
        %v806 = vld [vmem:[%s612 + $0xd8] sm:$0xff]
        %v807 = vld [vmem:[%s612 + $0xe0] sm:$0xff]
        %v808 = vld [vmem:[%s612 + $0xe8] sm:$0xff]
        %v809 = vld [vmem:[%s612 + $0xf0] sm:$0xff]
        %v810 = vld [vmem:[%s612 + $0xf8] sm:$0xff]
        %v811 = vld [vmem:[%s612 + $0x100] sm:$0xff]
        %v812 = vld [vmem:[%s612 + $0x108] sm:$0xff]
        %v813 = vld [vmem:[%s612 + $0x110] sm:$0xff]
        %v814 = vld [vmem:[%s612 + $0x118] sm:$0xff]
        %v815 = vld [vmem:[%s612 + $0x120] sm:$0xff]
        %v816 = vld [vmem:[%s612 + $0x128] sm:$0xff]
        %v817 = vld [vmem:[%s612 + $0x130] sm:$0xff]
        %v818 = vld [vmem:[%s612 + $0x138] sm:$0xff]
        %v819 = vld [vmem:[%s612 + $0x140] sm:$0xff]
        %v820 = vld [vmem:[%s612 + $0x148] sm:$0xff]
        %v821 = vld [vmem:[%s612 + $0x150] sm:$0xff]
        %v822 = vld [vmem:[%s612 + $0x158] sm:$0xff]
        %v823 = vld [vmem:[%s612 + $0x160] sm:$0xff]
        %v824 = vld [vmem:[%s612 + $0x168] sm:$0xff]
        %v825 = vld [vmem:[%s612 + $0x170] sm:$0xff]
        %v826 = vld [vmem:[%s612 + $0x178] sm:$0xff]
        %v827 = vld [vmem:[%s745] sm:$0x7]
        %v828 = vld [vmem:[%s622] sm:$0xff]
        %v829 = vld [vmem:[%s622 + $0x8] sm:$0xff]
        %v830 = vld [vmem:[%s622 + $0x10] sm:$0xff]
        %v831 = vld [vmem:[%s622 + $0x18] sm:$0xff]
        %v832 = vld [vmem:[%s622 + $0x20] sm:$0xff]
        %v833 = vld [vmem:[%s622 + $0x28] sm:$0xff]
        %v834 = vld [vmem:[%s622 + $0x30] sm:$0xff]
        %v835 = vld [vmem:[%s622 + $0x38] sm:$0xff]
        %v836 = vld [vmem:[%s622 + $0x40] sm:$0xff]
        %v837 = vld [vmem:[%s622 + $0x48] sm:$0xff]
        %v838 = vld [vmem:[%s622 + $0x50] sm:$0xff]
        %v839 = vld [vmem:[%s622 + $0x58] sm:$0xff]
        %v840 = vld [vmem:[%s622 + $0x60] sm:$0xff]
        %v841 = vld [vmem:[%s622 + $0x68] sm:$0xff]
        %v842 = vld [vmem:[%s622 + $0x70] sm:$0xff]
        %v843 = vld [vmem:[%s622 + $0x78] sm:$0xff]
        %v844 = vld [vmem:[%s748] sm:$0x1]
        %v845 = vld [vmem:[%s632] sm:$0xff]
        %v846 = vld [vmem:[%s632 + $0x8] sm:$0xff]
        %v847 = vld [vmem:[%s632 + $0x10] sm:$0xff]
        %v848 = vld [vmem:[%s632 + $0x18] sm:$0xff]
        %v849 = vld [vmem:[%s632 + $0x20] sm:$0xff]
        %v850 = vld [vmem:[%s632 + $0x28] sm:$0xff]
        %v851 = vld [vmem:[%s632 + $0x30] sm:$0xff]
        %v852 = vld [vmem:[%s632 + $0x38] sm:$0xff]
        %v853 = vld [vmem:[%s632 + $0x40] sm:$0xff]
        %v854 = vld [vmem:[%s632 + $0x48] sm:$0xff]
        %v855 = vld [vmem:[%s632 + $0x50] sm:$0xff]
        %v856 = vld [vmem:[%s632 + $0x58] sm:$0xff]
        %v857 = vld [vmem:[%s632 + $0x60] sm:$0xff]
        %v858 = vld [vmem:[%s632 + $0x68] sm:$0xff]
        %v859 = vld [vmem:[%s632 + $0x70] sm:$0xff]
        %v860 = vld [vmem:[%s632 + $0x78] sm:$0xff]
        %v861 = vld [vmem:[%s632 + $0x80] sm:$0xff]
        %v862 = vld [vmem:[%s632 + $0x88] sm:$0xff]
        %v863 = vld [vmem:[%s632 + $0x90] sm:$0xff]
        %v864 = vld [vmem:[%s632 + $0x98] sm:$0xff]
        %v865 = vld [vmem:[%s632 + $0xa0] sm:$0xff]
        %v866 = vld [vmem:[%s632 + $0xa8] sm:$0xff]
        %v867 = vld [vmem:[%s632 + $0xb0] sm:$0xff]
        %v868 = vld [vmem:[%s632 + $0xb8] sm:$0xff]
        %v869 = vld [vmem:[%s632 + $0xc0] sm:$0xff]
        %v870 = vld [vmem:[%s632 + $0xc8] sm:$0xff]
        %v871 = vld [vmem:[%s632 + $0xd0] sm:$0xff]
        %v872 = vld [vmem:[%s632 + $0xd8] sm:$0xff]
        %v873 = vld [vmem:[%s632 + $0xe0] sm:$0xff]
        %v874 = vld [vmem:[%s632 + $0xe8] sm:$0xff]
        %v875 = vld [vmem:[%s632 + $0xf0] sm:$0xff]
        %v876 = vld [vmem:[%s632 + $0xf8] sm:$0xff]
        %v877 = vld [vmem:[%s758] sm:$0x3]
        %v878 = vld [vmem:[%s642] sm:$0xff]
        %v879 = vld [vmem:[%s642 + $0x8] sm:$0xff]
        %v880 = vld [vmem:[%s642 + $0x10] sm:$0xff]
        %v881 = vld [vmem:[%s642 + $0x18] sm:$0xff]
        %v882 = vld [vmem:[%s642 + $0x20] sm:$0xff]
        %v883 = vld [vmem:[%s642 + $0x28] sm:$0xff]
        %v884 = vld [vmem:[%s642 + $0x30] sm:$0xff]
        %v885 = vld [vmem:[%s642 + $0x38] sm:$0xff]
        %v886 = vld [vmem:[%s642 + $0x40] sm:$0xff]
        %v887 = vld [vmem:[%s642 + $0x48] sm:$0xff]
        %v888 = vld [vmem:[%s642 + $0x50] sm:$0xff]
        %v889 = vld [vmem:[%s642 + $0x58] sm:$0xff]
        %v890 = vld [vmem:[%s642 + $0x60] sm:$0xff]
        %v891 = vld [vmem:[%s642 + $0x68] sm:$0xff]
        %v892 = vld [vmem:[%s642 + $0x70] sm:$0xff]
        %v893 = vld [vmem:[%s642 + $0x78] sm:$0xff]
        %v894 = vld [vmem:[%s642 + $0x80] sm:$0xff]
        %v895 = vld [vmem:[%s642 + $0x88] sm:$0xff]
        %v896 = vld [vmem:[%s642 + $0x90] sm:$0xff]
        %v897 = vld [vmem:[%s642 + $0x98] sm:$0xff]
        %v898 = vld [vmem:[%s642 + $0xa0] sm:$0xff]
        %v899 = vld [vmem:[%s642 + $0xa8] sm:$0xff]
        %v900 = vld [vmem:[%s642 + $0xb0] sm:$0xff]
        %v901 = vld [vmem:[%s642 + $0xb8] sm:$0xff]
        %v902 = vld [vmem:[%s642 + $0xc0] sm:$0xff]
        %v903 = vld [vmem:[%s642 + $0xc8] sm:$0xff]
        %v904 = vld [vmem:[%s642 + $0xd0] sm:$0xff]
        %v905 = vld [vmem:[%s642 + $0xd8] sm:$0xff]
        %v906 = vld [vmem:[%s642 + $0xe0] sm:$0xff]
        %v907 = vld [vmem:[%s642 + $0xe8] sm:$0xff]
        %v908 = vld [vmem:[%s642 + $0xf0] sm:$0xff]
        %v909 = vld [vmem:[%s642 + $0xf8] sm:$0xff]
        %v910 = vld [vmem:[%s761] sm:$0x1]
        %v911 = vld [vmem:[%s751] sm:$0x1]
        %v912 = vld [vmem:[%s754] sm:$0x1]
        %v913 = vld [vmem:[%s764] sm:$0x1]
        %v914 = vld [vmem:[%s767] sm:$0x1]
        %v915 = vld [vmem:[%s741] sm:$0x1]
        %v917 = vperm.slane %v827, 0
        %v918 = vperm.slane %v827, 1
        %v919 = vperm.slane %v827, 2
        %923 = vmatpush.msra.mxu0 %v824
        %924 = vmatpush.msra.mxu0 %v821
        %925 = vmatpush.msra.mxu0 %v818
        %926 = vmatpush.msra.mxu0 %v815
        %927 = vmatpush.msra.mxu0 %v812
        %928 = vmatpush.msra.mxu0 %v809
        %929 = vmatpush.msra.mxu0 %v806
        %930 = vmatpush.msra.mxu0 %v803
        %931 = vmatpush.msra.mxu0 %v800
        %932 = vmatpush.msra.mxu0 %v797
        %933 = vmatpush.msra.mxu0 %v794
        %934 = vmatpush.msra.mxu0 %v791
        %935 = vmatpush.msra.mxu0 %v788
        %936 = vmatpush.msra.mxu0 %v785
        %937 = vmatpush.msra.mxu0 %v782
        %938 = vmatpush.msra.mxu0 %v779
        %939 = vmatmul.f32.gmra.mxu0 %v778
        %v940 = vpop.f32.mrf.mxu0
        %v941 = vadd.f32 %v917, %v940
        %942 = vdwg.mxu0
        %943 = vmatpush.msra.mxu0 %v825
        %944 = vmatpush.msra.mxu0 %v822
        %945 = vmatpush.msra.mxu0 %v819
        %946 = vmatpush.msra.mxu0 %v816
        %947 = vmatpush.msra.mxu0 %v813
        %948 = vmatpush.msra.mxu0 %v810
        %949 = vmatpush.msra.mxu0 %v807
        %950 = vmatpush.msra.mxu0 %v804
        %951 = vmatpush.msra.mxu0 %v801
        %952 = vmatpush.msra.mxu0 %v798
        %953 = vmatpush.msra.mxu0 %v795
        %954 = vmatpush.msra.mxu0 %v792
        %955 = vmatpush.msra.mxu0 %v789
        %956 = vmatpush.msra.mxu0 %v786
        %957 = vmatpush.msra.mxu0 %v783
        %958 = vmatpush.msra.mxu0 %v780
        %959 = vmatmul.f32.gmra.mxu0 %v778
        %v960 = vpop.f32.mrf.mxu0
        %v961 = vadd.f32 %v918, %v960
        %962 = vdwg.mxu0
        %963 = vmatpush.msra.mxu0 %v826
        %964 = vmatpush.msra.mxu0 %v823
        %965 = vmatpush.msra.mxu0 %v820
        %966 = vmatpush.msra.mxu0 %v817
        %967 = vmatpush.msra.mxu0 %v814
        %968 = vmatpush.msra.mxu0 %v811
        %969 = vmatpush.msra.mxu0 %v808
        %970 = vmatpush.msra.mxu0 %v805
        %971 = vmatpush.msra.mxu0 %v802
        %972 = vmatpush.msra.mxu0 %v799
        %973 = vmatpush.msra.mxu0 %v796
        %974 = vmatpush.msra.mxu0 %v793
        %975 = vmatpush.msra.mxu0 %v790
        %976 = vmatpush.msra.mxu0 %v787
        %977 = vmatpush.msra.mxu0 %v784
        %978 = vmatpush.msra.mxu0 %v781
        %979 = vmatmul.f32.gmra.mxu0 %v778
        %v980 = vpop.f32.mrf.mxu0
        %v981 = vadd.f32 %v919, %v980
        %982 = vdwg.mxu0
        %v983 = vmul.f32 %v941, 0.17677669
        %v985 = vperm.slane %v915, 0
        %vm987 = vcmask 261120
        %v989 = vsel %vm987, %v983, 0
        %v992 = vsel %vm987, %v961, 0
        %994 = vmatpush.xpose.msra.mxu0 0.0
        %995 = vmatpush.xpose.msra.mxu0 0.0
        %996 = vmatpush.xpose.msra.mxu0 0.0
        %997 = vmatpush.xpose.msra.mxu0 0.0
        %998 = vmatpush.xpose.msra.mxu0 0.0
        %999 = vmatpush.xpose.msra.mxu0 0.0
        %1000 = vmatpush.xpose.msra.mxu0 0.0
        %1001 = vmatpush.xpose.msra.mxu0 0.0
        %1002 = vmatpush.xpose.msra.mxu0 0.0
        %1003 = vmatpush.xpose.msra.mxu0 0.0
        %1004 = vmatpush.xpose.msra.mxu0 0.0
        %1005 = vmatpush.xpose.msra.mxu0 0.0
        %1006 = vmatpush.xpose.msra.mxu0 0.0
        %1007 = vmatpush.xpose.msra.mxu0 0.0
        %1008 = vmatpush.xpose.msra.mxu0 0.0
        %1009 = vmatpush.xpose.msra.mxu0 %v992
        %1010 = vmatmul.f32.gmra.mxu0 %v989
        %v1011 = vpop.f32.mrf.mxu0
        %v1012 = vadd.f32 %v985, %v1011
        %1013 = vdwg.mxu0
        %vm1014 = vcmask 64512
        %v1015 = vsel %vm1014, %v1012, -inf
        %1016 = vmax.xlane.f32.xlu0 %v1015
        %v1017 = vpop.xlane.xlu0 %1016
        %v1018 = vsub.f32 %v1012, %v1017
        %v1019 = vmul.f32 %v1018, 1.442695
        %v1020 = vpow.pop %v1019
        %v1021 = vsel %vm1014, %v1020, 0.0
        %1022 = vadd.xlane.f32.xlu0 %v1021
        %v1023 = vpop.xlane.xlu0 %1022
        %v1024 = vrcp.pop %v1023
        %v1025 = vmul.f32 %v1020, %v1024
        %v1027 = vsel %vm1014, %v1025, 0
        %1029 = vmatpush.msra.mxu0 0.0
        %1030 = vmatpush.msra.mxu0 0.0
        %1031 = vmatpush.msra.mxu0 0.0
        %1032 = vmatpush.msra.mxu0 0.0
        %1033 = vmatpush.msra.mxu0 0.0
        %1034 = vmatpush.msra.mxu0 0.0
        %1035 = vmatpush.msra.mxu0 0.0
        %1036 = vmatpush.msra.mxu0 0.0
        %1037 = vmatpush.msra.mxu0 0.0
        %1038 = vmatpush.msra.mxu0 0.0
        %1039 = vmatpush.msra.mxu0 0.0
        %1040 = vmatpush.msra.mxu0 0.0
        %1041 = vmatpush.msra.mxu0 0.0
        %1042 = vmatpush.msra.mxu0 0.0
        %1043 = vmatpush.msra.mxu0 0.0
        %1044 = vmatpush.msra.mxu0 %v981
        %1045 = vmatmul.f32.gmra.mxu0 %v1027
        %v1046 = vpop.f32.mrf.mxu0
        %v1047 = vadd.f32 0.0, %v1046
        %1048 = vdwg.mxu0
        %1049 = vrot.lane.b32.xlu0 %v983, 96
        %v1050 = vpop.permute.xlu0 %1049
        %1051 = vrot.lane.b32.xlu0 %v961, 96
        %v1052 = vpop.permute.xlu0 %1051
        %v1053 = vsel %vm987, %v1050, 0
        %v1055 = vsel %vm987, %v1052, 0
        %1057 = vmatpush.xpose.msra.mxu0 0.0
        %1058 = vmatpush.xpose.msra.mxu0 0.0
        %1059 = vmatpush.xpose.msra.mxu0 0.0
        %1060 = vmatpush.xpose.msra.mxu0 0.0
        %1061 = vmatpush.xpose.msra.mxu0 0.0
        %1062 = vmatpush.xpose.msra.mxu0 0.0
        %1063 = vmatpush.xpose.msra.mxu0 0.0
        %1064 = vmatpush.xpose.msra.mxu0 0.0
        %1065 = vmatpush.xpose.msra.mxu0 0.0
        %1066 = vmatpush.xpose.msra.mxu0 0.0
        %1067 = vmatpush.xpose.msra.mxu0 0.0
        %1068 = vmatpush.xpose.msra.mxu0 0.0
        %1069 = vmatpush.xpose.msra.mxu0 0.0
        %1070 = vmatpush.xpose.msra.mxu0 0.0
        %1071 = vmatpush.xpose.msra.mxu0 0.0
        %1072 = vmatpush.xpose.msra.mxu0 %v1055
        %1073 = vmatmul.f32.gmra.mxu0 %v1053
        %v1074 = vpop.f32.mrf.mxu0
        %v1075 = vadd.f32 %v985, %v1074
        %1076 = vdwg.mxu0
        %v1077 = vsel %vm1014, %v1075, -inf
        %1078 = vmax.xlane.f32.xlu0 %v1077
        %v1079 = vpop.xlane.xlu0 %1078
        %v1080 = vsub.f32 %v1075, %v1079
        %v1081 = vmul.f32 %v1080, 1.442695
        %v1082 = vpow.pop %v1081
        %v1083 = vsel %vm1014, %v1082, 0.0
        %1084 = vadd.xlane.f32.xlu0 %v1083
        %v1085 = vpop.xlane.xlu0 %1084
        %v1086 = vrcp.pop %v1085
        %v1087 = vmul.f32 %v1082, %v1086
        %1089 = vrot.lane.b32.xlu0 %v981, 96
        %v1090 = vpop.permute.xlu0 %1089
        %v1093 = vsel %vm1014, %v1087, 0
        %1095 = vmatpush.msra.mxu0 0.0
        %1096 = vmatpush.msra.mxu0 0.0
        %1097 = vmatpush.msra.mxu0 0.0
        %1098 = vmatpush.msra.mxu0 0.0
        %1099 = vmatpush.msra.mxu0 0.0
        %1100 = vmatpush.msra.mxu0 0.0
        %1101 = vmatpush.msra.mxu0 0.0
        %1102 = vmatpush.msra.mxu0 0.0
        %1103 = vmatpush.msra.mxu0 0.0
        %1104 = vmatpush.msra.mxu0 0.0
        %1105 = vmatpush.msra.mxu0 0.0
        %1106 = vmatpush.msra.mxu0 0.0
        %1107 = vmatpush.msra.mxu0 0.0
        %1108 = vmatpush.msra.mxu0 0.0
        %1109 = vmatpush.msra.mxu0 0.0
        %1110 = vmatpush.msra.mxu0 %v1090
        %1111 = vmatmul.f32.gmra.mxu0 %v1093
        %v1112 = vpop.f32.mrf.mxu0
        %v1113 = vadd.f32 0.0, %v1112
        %1114 = vdwg.mxu0
        %1115 = vrot.lane.b32.xlu0 %v983, 64
        %v1116 = vpop.permute.xlu0 %1115
        %1117 = vrot.lane.b32.xlu0 %v961, 64
        %v1118 = vpop.permute.xlu0 %1117
        %v1119 = vsel %vm987, %v1116, 0
        %v1121 = vsel %vm987, %v1118, 0
        %1123 = vmatpush.xpose.msra.mxu0 0.0
        %1124 = vmatpush.xpose.msra.mxu0 0.0
        %1125 = vmatpush.xpose.msra.mxu0 0.0
        %1126 = vmatpush.xpose.msra.mxu0 0.0
        %1127 = vmatpush.xpose.msra.mxu0 0.0
        %1128 = vmatpush.xpose.msra.mxu0 0.0
        %1129 = vmatpush.xpose.msra.mxu0 0.0
        %1130 = vmatpush.xpose.msra.mxu0 0.0
        %1131 = vmatpush.xpose.msra.mxu0 0.0
        %1132 = vmatpush.xpose.msra.mxu0 0.0
        %1133 = vmatpush.xpose.msra.mxu0 0.0
        %1134 = vmatpush.xpose.msra.mxu0 0.0
        %1135 = vmatpush.xpose.msra.mxu0 0.0
        %1136 = vmatpush.xpose.msra.mxu0 0.0
        %1137 = vmatpush.xpose.msra.mxu0 0.0
        %1138 = vmatpush.xpose.msra.mxu0 %v1121
        %1139 = vmatmul.f32.gmra.mxu0 %v1119
        %v1140 = vpop.f32.mrf.mxu0
        %v1141 = vadd.f32 %v985, %v1140
        %1142 = vdwg.mxu0
        %v1143 = vsel %vm1014, %v1141, -inf
        %1144 = vmax.xlane.f32.xlu0 %v1143
        %v1145 = vpop.xlane.xlu0 %1144
        %v1146 = vsub.f32 %v1141, %v1145
        %v1147 = vmul.f32 %v1146, 1.442695
        %v1148 = vpow.pop %v1147
        %v1149 = vsel %vm1014, %v1148, 0.0
        %1150 = vadd.xlane.f32.xlu0 %v1149
        %v1151 = vpop.xlane.xlu0 %1150
        %v1152 = vrcp.pop %v1151
        %v1153 = vmul.f32 %v1148, %v1152
        %1154 = vrot.lane.b32.xlu0 %v981, 64
        %v1155 = vpop.permute.xlu0 %1154
        %v1158 = vsel %vm1014, %v1153, 0
        %1160 = vmatpush.msra.mxu0 0.0
        %1161 = vmatpush.msra.mxu0 0.0
        %1162 = vmatpush.msra.mxu0 0.0
        %1163 = vmatpush.msra.mxu0 0.0
        %1164 = vmatpush.msra.mxu0 0.0
        %1165 = vmatpush.msra.mxu0 0.0
        %1166 = vmatpush.msra.mxu0 0.0
        %1167 = vmatpush.msra.mxu0 0.0
        %1168 = vmatpush.msra.mxu0 0.0
        %1169 = vmatpush.msra.mxu0 0.0
        %1170 = vmatpush.msra.mxu0 0.0
        %1171 = vmatpush.msra.mxu0 0.0
        %1172 = vmatpush.msra.mxu0 0.0
        %1173 = vmatpush.msra.mxu0 0.0
        %1174 = vmatpush.msra.mxu0 0.0
        %1175 = vmatpush.msra.mxu0 %v1155
        %1176 = vmatmul.f32.gmra.mxu0 %v1158
        %v1177 = vpop.f32.mrf.mxu0
        %v1178 = vadd.f32 0.0, %v1177
        %1179 = vdwg.mxu0
        %1180 = vrot.lane.b32.xlu0 %v983, 32
        %v1181 = vpop.permute.xlu0 %1180
        %1182 = vrot.lane.b32.xlu0 %v961, 32
        %v1183 = vpop.permute.xlu0 %1182
        %v1184 = vsel %vm987, %v1181, 0
        %v1186 = vsel %vm987, %v1183, 0
        %1188 = vmatpush.xpose.msra.mxu0 0.0
        %1189 = vmatpush.xpose.msra.mxu0 0.0
        %1190 = vmatpush.xpose.msra.mxu0 0.0
        %1191 = vmatpush.xpose.msra.mxu0 0.0
        %1192 = vmatpush.xpose.msra.mxu0 0.0
        %1193 = vmatpush.xpose.msra.mxu0 0.0
        %1194 = vmatpush.xpose.msra.mxu0 0.0
        %1195 = vmatpush.xpose.msra.mxu0 0.0
        %1196 = vmatpush.xpose.msra.mxu0 0.0
        %1197 = vmatpush.xpose.msra.mxu0 0.0
        %1198 = vmatpush.xpose.msra.mxu0 0.0
        %1199 = vmatpush.xpose.msra.mxu0 0.0
        %1200 = vmatpush.xpose.msra.mxu0 0.0
        %1201 = vmatpush.xpose.msra.mxu0 0.0
        %1202 = vmatpush.xpose.msra.mxu0 0.0
        %1203 = vmatpush.xpose.msra.mxu0 %v1186
        %1204 = vmatmul.f32.gmra.mxu0 %v1184
        %v1205 = vpop.f32.mrf.mxu0
        %v1206 = vadd.f32 %v985, %v1205
        %1207 = vdwg.mxu0
        %v1208 = vsel %vm1014, %v1206, -inf
        %1209 = vmax.xlane.f32.xlu0 %v1208
        %v1210 = vpop.xlane.xlu0 %1209
        %v1211 = vsub.f32 %v1206, %v1210
        %v1212 = vmul.f32 %v1211, 1.442695
        %v1213 = vpow.pop %v1212
        %v1214 = vsel %vm1014, %v1213, 0.0
        %1215 = vadd.xlane.f32.xlu0 %v1214
        %v1216 = vpop.xlane.xlu0 %1215
        %v1217 = vrcp.pop %v1216
        %v1218 = vmul.f32 %v1213, %v1217
        %1219 = vrot.lane.b32.xlu0 %v981, 32
        %v1220 = vpop.permute.xlu0 %1219
        %v1223 = vsel %vm1014, %v1218, 0
        %1225 = vmatpush.msra.mxu0 0.0
        %1226 = vmatpush.msra.mxu0 0.0
        %1227 = vmatpush.msra.mxu0 0.0
        %1228 = vmatpush.msra.mxu0 0.0
        %1229 = vmatpush.msra.mxu0 0.0
        %1230 = vmatpush.msra.mxu0 0.0
        %1231 = vmatpush.msra.mxu0 0.0
        %1232 = vmatpush.msra.mxu0 0.0
        %1233 = vmatpush.msra.mxu0 0.0
        %1234 = vmatpush.msra.mxu0 0.0
        %1235 = vmatpush.msra.mxu0 0.0
        %1236 = vmatpush.msra.mxu0 0.0
        %1237 = vmatpush.msra.mxu0 0.0
        %1238 = vmatpush.msra.mxu0 0.0
        %1239 = vmatpush.msra.mxu0 0.0
        %1240 = vmatpush.msra.mxu0 %v1220
        %1241 = vmatmul.f32.gmra.mxu0 %v1223
        %v1242 = vpop.f32.mrf.mxu0
        %v1243 = vadd.f32 0.0, %v1242
        %1244 = vdwg.mxu0
        %1246 = vrot.lane.b32.xlu0 %v1113, 32
        %v1247 = vpop.permute.xlu0 %1246
        %1250 = vrot.lane.b32.xlu0 %v1178, 64
        %v1251 = vpop.permute.xlu0 %1250
        %1254 = vrot.lane.b32.xlu0 %v1243, 96
        %v1255 = vpop.permute.xlu0 %1254
        %v1257 = vsel %vm987, %v1047, %v1247
        %vm1258 = vcmask 523264
        %v1259 = vsel %vm1258, %v1257, %v1251
        %vm1260 = vcmask 785408
        %v1261 = vsel %vm1260, %v1259, %v1255
        %v1263 = vperm.slane %v844, 0
        %1265 = vmatpush.msra.mxu0 %v843
        %1266 = vmatpush.msra.mxu0 %v842
        %1267 = vmatpush.msra.mxu0 %v841
        %1268 = vmatpush.msra.mxu0 %v840
        %1269 = vmatpush.msra.mxu0 %v839
        %1270 = vmatpush.msra.mxu0 %v838
        %1271 = vmatpush.msra.mxu0 %v837
        %1272 = vmatpush.msra.mxu0 %v836
        %1273 = vmatpush.msra.mxu0 %v835
        %1274 = vmatpush.msra.mxu0 %v834
        %1275 = vmatpush.msra.mxu0 %v833
        %1276 = vmatpush.msra.mxu0 %v832
        %1277 = vmatpush.msra.mxu0 %v831
        %1278 = vmatpush.msra.mxu0 %v830
        %1279 = vmatpush.msra.mxu0 %v829
        %1280 = vmatpush.msra.mxu0 %v828
        %1281 = vmatmul.f32.gmra.mxu0 %v1261
        %v1282 = vpop.f32.mrf.mxu0
        %v1283 = vadd.f32 %v1263, %v1282
        %1284 = vdwg.mxu0
        %v1285 = vadd.f32 %v778, %v1283
        %1286 = vadd.xlane.f32.xlu0 %v1285
        %v1287 = vpop.xlane.xlu0 %1286
        %v1288 = vrcp.pop 128.0
        %v1289 = vmul.f32 128.0, %v1288
        %v1290 = vsub.f32 1.0, %v1289
        %v1291 = vmul.f32 %v1288, %v1290
        %v1292 = vadd.f32 %v1288, %v1291
        %vm1293 = vweird.f32 %v1288
        %v1294 = vsel %vm1293, %v1288, %v1292
        %v1295 = vmul.f32 %v1287, %v1294
        %v1296 = vsub.f32 %v1285, %v1295
        %v1297 = vmul.f32 %v1296, %v1296
        %1298 = vadd.xlane.f32.xlu0 %v1297
        %v1299 = vpop.xlane.xlu0 %1298
        %v1300 = vmul.f32 %v1299, %v1294
        %v1301 = vadd.f32 %v1300, 1e-12
        %v1302 = vrsqrt.pop %v1301
        %v1303 = vmul.f32 %v1302, %v1301
        %v1304 = vmul.f32 %v1303, %v1302
        %v1305 = vmul.f32 0.5, %v1304
        %v1306 = vsub.f32 1.5, %v1305
        %v1307 = vmul.f32 %v1302, %v1306
        %vm1308 = vweird.f32 %v1301
        %vm1309 = vweird.f32 %v1302
        %vm1310 = vmor %vm1308, %vm1309
        %v1311 = vsel %vm1310, %v1302, %v1307
        %v1312 = vmul.f32 %v1296, %v1311
        %v1314 = vperm.slane %v911, 0
        %v1316 = vmul.f32 %v1312, %v1314
        %v1318 = vperm.slane %v912, 0
        %v1320 = vadd.f32 %v1316, %v1318
        %v1322 = vperm.slane %v877, 0
        %v1323 = vperm.slane %v877, 1
        %1326 = vmatpush.msra.mxu0 %v875
        %1327 = vmatpush.msra.mxu0 %v873
        %1328 = vmatpush.msra.mxu0 %v871
        %1329 = vmatpush.msra.mxu0 %v869
        %1330 = vmatpush.msra.mxu0 %v867
        %1331 = vmatpush.msra.mxu0 %v865
        %1332 = vmatpush.msra.mxu0 %v863
        %1333 = vmatpush.msra.mxu0 %v861
        %1334 = vmatpush.msra.mxu0 %v859
        %1335 = vmatpush.msra.mxu0 %v857
        %1336 = vmatpush.msra.mxu0 %v855
        %1337 = vmatpush.msra.mxu0 %v853
        %1338 = vmatpush.msra.mxu0 %v851
        %1339 = vmatpush.msra.mxu0 %v849
        %1340 = vmatpush.msra.mxu0 %v847
        %1341 = vmatpush.msra.mxu0 %v845
        %1342 = vmatmul.f32.gmra.mxu0 %v1320
        %v1343 = vpop.f32.mrf.mxu0
        %v1344 = vadd.f32 %v1322, %v1343
        %1345 = vdwg.mxu0
        %1346 = vmatpush.msra.mxu0 %v876
        %1347 = vmatpush.msra.mxu0 %v874
        %1348 = vmatpush.msra.mxu0 %v872
        %1349 = vmatpush.msra.mxu0 %v870
        %1350 = vmatpush.msra.mxu0 %v868
        %1351 = vmatpush.msra.mxu0 %v866
        %1352 = vmatpush.msra.mxu0 %v864
        %1353 = vmatpush.msra.mxu0 %v862
        %1354 = vmatpush.msra.mxu0 %v860
        %1355 = vmatpush.msra.mxu0 %v858
        %1356 = vmatpush.msra.mxu0 %v856
        %1357 = vmatpush.msra.mxu0 %v854
        %1358 = vmatpush.msra.mxu0 %v852
        %1359 = vmatpush.msra.mxu0 %v850
        %1360 = vmatpush.msra.mxu0 %v848
        %1361 = vmatpush.msra.mxu0 %v846
        %1362 = vmatmul.f32.gmra.mxu0 %v1320
        %v1363 = vpop.f32.mrf.mxu0
        %v1364 = vadd.f32 %v1323, %v1363
        %1365 = vdwg.mxu0
        %v1366 = vmul.f32 %v1344, %v1344
        %v1367 = vmul.f32 %v1364, %v1364
        %v1368 = vmul.f32 %v1344, %v1366
        %v1369 = vmul.f32 %v1364, %v1367
        %v1370 = vmul.f32 %v1368, 0.044715
        %v1371 = vmul.f32 %v1369, 0.044715
        %v1372 = vadd.f32 %v1344, %v1370
        %v1373 = vadd.f32 %v1364, %v1371
        %v1374 = vmul.f32 %v1372, 0.7978846
        %v1375 = vmul.f32 %v1373, 0.7978846
        %v1376 = vtanh.pop %v1374
        %v1377 = vtanh.pop %v1375
        %v1378 = vadd.f32 %v1376, 1.0
        %v1379 = vadd.f32 %v1377, 1.0
        %v1380 = vmul.f32 %v1378, 0.5
        %v1381 = vmul.f32 %v1379, 0.5
        %v1382 = vmul.f32 %v1344, %v1380
        %v1383 = vmul.f32 %v1364, %v1381
        %v1385 = vperm.slane %v910, 0
        %1387 = vmatpush.msra.mxu0 %v893
        %1388 = vmatpush.msra.mxu0 %v892
        %1389 = vmatpush.msra.mxu0 %v891
        %1390 = vmatpush.msra.mxu0 %v890
        %1391 = vmatpush.msra.mxu0 %v889
        %1392 = vmatpush.msra.mxu0 %v888
        %1393 = vmatpush.msra.mxu0 %v887
        %1394 = vmatpush.msra.mxu0 %v886
        %1395 = vmatpush.msra.mxu0 %v885
        %1396 = vmatpush.msra.mxu0 %v884
        %1397 = vmatpush.msra.mxu0 %v883
        %1398 = vmatpush.msra.mxu0 %v882
        %1399 = vmatpush.msra.mxu0 %v881
        %1400 = vmatpush.msra.mxu0 %v880
        %1401 = vmatpush.msra.mxu0 %v879
        %1402 = vmatpush.msra.mxu0 %v878
        %1403 = vmatmul.f32.gmra.mxu0 %v1382
        %v1404 = vpop.f32.mrf.mxu0
        %v1405 = vadd.f32 %v1385, %v1404
        %1406 = vdwg.mxu0
        %1407 = vmatpush.msra.mxu0 %v909
        %1408 = vmatpush.msra.mxu0 %v908
        %1409 = vmatpush.msra.mxu0 %v907
        %1410 = vmatpush.msra.mxu0 %v906
        %1411 = vmatpush.msra.mxu0 %v905
        %1412 = vmatpush.msra.mxu0 %v904
        %1413 = vmatpush.msra.mxu0 %v903
        %1414 = vmatpush.msra.mxu0 %v902
        %1415 = vmatpush.msra.mxu0 %v901
        %1416 = vmatpush.msra.mxu0 %v900
        %1417 = vmatpush.msra.mxu0 %v899
        %1418 = vmatpush.msra.mxu0 %v898
        %1419 = vmatpush.msra.mxu0 %v897
        %1420 = vmatpush.msra.mxu0 %v896
        %1421 = vmatpush.msra.mxu0 %v895
        %1422 = vmatpush.msra.mxu0 %v894
        %1423 = vmatmul.f32.gmra.mxu0 %v1383
        %v1424 = vpop.f32.mrf.mxu0
        %v1425 = vadd.f32 %v1405, %v1424
        %1426 = vdwg.mxu0
        %v1427 = vadd.f32 %v1320, %v1425
        %1428 = vadd.xlane.f32.xlu0 %v1427
        %v1429 = vpop.xlane.xlu0 %1428
        %v1430 = vmul.f32 %v1429, %v1294
        %v1431 = vsub.f32 %v1427, %v1430
        %v1432 = vmul.f32 %v1431, %v1431
        %1433 = vadd.xlane.f32.xlu0 %v1432
        %v1434 = vpop.xlane.xlu0 %1433
        %v1435 = vmul.f32 %v1434, %v1294
        %v1436 = vadd.f32 %v1435, 1e-12
        %v1437 = vrsqrt.pop %v1436
        %v1438 = vmul.f32 %v1437, %v1436
        %v1439 = vmul.f32 %v1438, %v1437
        %v1440 = vmul.f32 0.5, %v1439
        %v1441 = vsub.f32 1.5, %v1440
        %v1442 = vmul.f32 %v1437, %v1441
        %vm1443 = vweird.f32 %v1436
        %vm1444 = vweird.f32 %v1437
        %vm1445 = vmor %vm1443, %vm1444
        %v1446 = vsel %vm1445, %v1437, %v1442
        %v1447 = vmul.f32 %v1431, %v1446
        %v1449 = vperm.slane %v913, 0
        %v1451 = vmul.f32 %v1447, %v1449
        %v1453 = vperm.slane %v914, 0
        %v1455 = vadd.f32 %v1451, %v1453
        %1456 = vst [vmem:[%s771] sm:$0xff] %v1455
        %p1457 = scmp.lt.s32.totalorder %s38, 1
        %s1458 = scalar_select %p1457, %s38, 1
        %s1459 = smul.addr %s1458, 8
        %s1460 = scalar_lea.vmem %s14, %s1459
        // Predicated region
        $region97: #{bert_forward.1} parent=75 // pred_check
          %p1461 = pneg %p428
        $region98: #{bert_forward.1} parent=75 // pred_check_branch
          %1463 = sbr.rel (%p1461) target = $region100
        $region99: #{bert_forward.1} parent=75 // pred_region
          _
        $region100: #{bert_forward.1} parent=75 // pred_fallthru
          _
      $region76: #{bert_forward.1} parent=5 // pred_fallthru
        _
      %p1464 = scmp.le.s32.totalorder 2, %s29
      // Predicated region
      $region101: #{bert_forward.1} parent=5 // pred_check
        %p1465 = pneg %p1464
      $region102: #{bert_forward.1} parent=5 // pred_check_branch
        %1467 = sbr.rel (%p1465) target = $region104
      $region103: #{bert_forward.1} parent=5 // pred_region
        %s1468 = ssub.s32 %s29, 2
        // Predicated region
        $region105: #{bert_forward.1} parent=103 // pred_check
          %p1469 = pneg %p434
        $region106: #{bert_forward.1} parent=103 // pred_check_branch
          %1471 = sbr.rel (%p1469) target = $region108
        $region107: #{bert_forward.1} parent=103 // pred_region
          %p1472 = scmp.lt.s32.totalorder %s40, 1
          %s1473 = scalar_select %p1472, %s40, 1
          %s1474 = smul.addr %s1473, 8
          %s1475 = scalar_lea.vmem %s14, %s1474
        $region108: #{bert_forward.1} parent=103 // pred_fallthru
          _
      $region104: #{bert_forward.1} parent=5 // pred_fallthru
        _
    $region6: #{bert_forward.1} parent=1 // loop_footer
      %s33 = sadd.s32 1, %s29
    $region7: #{bert_forward.1} parent=1 // loop_footer_branch
      %28 = sbr.rel target = $region3
    $region8: #{bert_forward.1} parent=1 // loop_exit
      _
    %1476 = vsyncpa [#allocation3], 1
    %s1477 = scalar_lea.sflag [#allocation3], 1
    %1478 = vsyncpa %s1477, 1
    %1479 = vsyncpa [#allocation5], 1
    %s1480 = scalar_lea.sflag [#allocation5], 1
    %1481 = vsyncpa %s1480, 1
    %1482 = vsyncpa [#allocation8], 1
    %s1483 = scalar_lea.sflag [#allocation8], 1
    %1484 = vsyncpa %s1483, 1

</llo_original>
